<compile_context>
chip_gen: v7x
topology: tpu7x:2x2x1
jax: 0.10.0
libtpu: 0.0.40
codegen_flags: <defaults>
</compile_context>

<pallas_src>
import jax
import jax.numpy as jnp
from jax.experimental import pallas as pl
from jax.experimental.pallas import tpu as pltpu


def _make_kernel(B, S_in, S_out, D, H):
    def kernel(x_ref,
               enc_wih_t_ref, enc_whh_t_ref, enc_b_ref,
               dec_wih_t_ref, dec_whh_t_ref, dec_w_fold_ref,
               dec_b_ref, dec_b_fold_ref,
               lin_w_t_ref, lin_b_ref,
               out_ref):
        x = x_ref[...]                         # (S_in*B, D) time-major flattened
        enc_wih_t = enc_wih_t_ref[...]         # (D, 4H)
        enc_whh_t = enc_whh_t_ref[...]         # (H, 4H)
        enc_b = enc_b_ref[...]                 # (1, 4H)  == b_ih + b_hh
        dec_wih_t = dec_wih_t_ref[...]         # (D, 4H)
        dec_whh_t = dec_whh_t_ref[...]         # (H, 4H)
        dec_w_fold = dec_w_fold_ref[...]       # (H, 4H)  == W_hh^T + lin_W^T @ W_ih^T
        dec_b = dec_b_ref[...]                 # (1, 4H)
        dec_b_fold = dec_b_fold_ref[...]       # (1, 4H)
        lin_w_t = lin_w_t_ref[...]             # (H, D)
        lin_b = lin_b_ref[...]                 # (1, D)

        # ---- hoisted constants: gate lane mask + broadcast biases ----
        lane = jax.lax.broadcasted_iota(jnp.int32, (B, 4 * H), 1)
        g_mask = jnp.logical_and(lane >= 2 * H, lane < 3 * H)   # g (cell) gate lanes
        dec_b_fold_b = jnp.broadcast_to(dec_b_fold, (B, 4 * H))
        lin_b_b = jnp.broadcast_to(lin_b, (S_out * B, D))

        def gate_step(gates, c):
            # Single EUP push on the gate vreg: tanh(x) = 2*sigmoid(2x) - 1.
            pre = jnp.where(g_mask, gates + gates, gates)       # VPU: scale g lanes by 2
            s = jax.nn.sigmoid(pre)                             # one full-vreg sigmoid
            act = jnp.where(g_mask, s + s - 1.0, s)             # VPU: fix g lanes
            i = act[:, 0 * H:1 * H]
            f = act[:, 1 * H:2 * H]
            g = act[:, 2 * H:3 * H]
            o = act[:, 3 * H:4 * H]
            c_new = f * c + i * g
            h_new = o * jnp.tanh(c_new)
            return h_new, c_new

        # ---- encoder: all input projections in one dense matmul (bias folded) ----
        xp = jnp.dot(x, enc_wih_t, preferred_element_type=jnp.float32) + enc_b  # (S_in*B, 4H)

        # ---- decoder step-0 input term (no h dependence -> off the critical path) ----
        x_last = x[(S_in - 1) * B:S_in * B, :]                  # x[:, -1, :] time-major
        dec0_in = (jnp.dot(x_last, dec_wih_t, preferred_element_type=jnp.float32)
                   + jnp.broadcast_to(dec_b, (B, 4 * H)))       # (B, 4H)

        # ---- encoder recurrence (small trip count -> fully unrolled) ----
        h = jnp.zeros((B, H), jnp.float32)
        c = jnp.zeros((B, H), jnp.float32)
        for t in range(S_in):
            gates = xp[t * B:(t + 1) * B, :] + jnp.dot(
                h, enc_whh_t, preferred_element_type=jnp.float32)
            h, c = gate_step(gates, c)

        # ---- decoder recurrence: one H-contraction matmul per step, no concat,
        #      no output-head matmul on the chain ----
        hs = []
        # step 0: input is x_last, so use the unfolded recurrent weight
        gates = dec0_in + jnp.dot(h, dec_whh_t, preferred_element_type=jnp.float32)
        h, c = gate_step(gates, c)
        hs.append(h)
        # steps 1..S_out-1: output head folded into the recurrent weight
        for _ in range(1, S_out):
            gates = jnp.dot(h, dec_w_fold, preferred_element_type=jnp.float32) + dec_b_fold_b
            h, c = gate_step(gates, c)
            hs.append(h)

        # ---- output head: one batched post-loop matmul over the stacked h's ----
        h_all = jnp.concatenate(hs, axis=0)                     # (S_out*B, H) sublane concat
        out_ref[...] = (jnp.dot(h_all, lin_w_t, preferred_element_type=jnp.float32)
                        + lin_b_b)                              # (S_out*B, D)

    return kernel


def enc_dec_lstm_forward(x, params, seq_out):
    """x: (B, seq_in, D) float32 (batch_first, like the PyTorch module)."""
    B, S_in, D = x.shape
    H = params["enc_whh_t"].shape[0]
    # time-major + flatten wrapper-side (plain XLA, keeps the kernel reshape-free)
    x_flat = jnp.transpose(x, (1, 0, 2)).reshape(S_in * B, D)
    vmem = pl.BlockSpec(memory_space=pltpu.MemorySpace.VMEM)
    kernel = _make_kernel(B, S_in, seq_out, D, H)
    out_flat = pl.pallas_call(
        kernel,
        out_shape=jax.ShapeDtypeStruct((seq_out * B, D), jnp.float32),
        in_specs=[vmem] * 11,
        out_specs=vmem,
    )(x_flat,
      params["enc_wih_t"], params["enc_whh_t"], params["enc_b"],
      params["dec_wih_t"], params["dec_whh_t"], params["dec_w_fold"],
      params["dec_b"], params["dec_b_fold"],
      params["lin_w_t"], params["lin_b"])
    # (S_out, B, D) -> (B, S_out, D) layout fix in XLA, not in-kernel.
    return jnp.transpose(out_flat.reshape(seq_out, B, D), (1, 0, 2))


def make_params(key, input_size, hidden_size):
    """Deterministic init matching PyTorch nn.LSTM / nn.Linear shapes."""
    D, H = input_size, hidden_size
    ks = jax.random.split(key, 10)
    s = 1.0 / jnp.sqrt(jnp.float32(H))
    u = lambda k, shp: jax.random.uniform(k, shp, jnp.float32, -s, s)

    enc_w_ih = u(ks[0], (4 * H, D))
    enc_w_hh = u(ks[1], (4 * H, H))
    enc_b_ih = u(ks[2], (4 * H,))
    enc_b_hh = u(ks[3], (4 * H,))
    dec_w_ih = u(ks[4], (4 * H, D))
    dec_w_hh = u(ks[5], (4 * H, H))
    dec_b_ih = u(ks[6], (4 * H,))
    dec_b_hh = u(ks[7], (4 * H,))
    lin_w = u(ks[8], (D, H))
    lin_b = u(ks[9], (D,))

    dec_wih_t = dec_w_ih.T                                      # (D, 4H)
    dec_whh_t = dec_w_hh.T                                      # (H, 4H)
    dec_b = (dec_b_ih + dec_b_hh)[None, :]                      # (1, 4H)
    lin_w_t = lin_w.T                                           # (H, D)
    lin_b = lin_b[None, :]                                      # (1, D)

    return {
        "enc_wih_t": enc_w_ih.T,                                # (D, 4H)
        "enc_whh_t": enc_w_hh.T,                                # (H, 4H)
        "enc_b": (enc_b_ih + enc_b_hh)[None, :],                # (1, 4H)
        "dec_wih_t": dec_wih_t,                                 # (D, 4H)
        "dec_whh_t": dec_whh_t,                                 # (H, 4H)
        # output head folded into the decoder recurrence (steps >= 1):
        "dec_w_fold": dec_whh_t + lin_w_t @ dec_wih_t,          # (H, 4H)
        "dec_b": dec_b,                                         # (1, 4H)
        "dec_b_fold": dec_b + lin_b @ dec_wih_t,                # (1, 4H)
        "lin_w_t": lin_w_t,                                     # (H, D)
        "lin_b": lin_b,                                         # (1, D)
    }


def reference_forward(x, params, seq_out):
    """Pure-JAX reference of the PyTorch forward (for correctness check)."""
    B, S_in, D = x.shape
    H = params["enc_whh_t"].shape[0]

    def cell(xt, h, c, wih_t, whh_t, b):
        g = xt @ wih_t + h @ whh_t + b
        i = jax.nn.sigmoid(g[:, 0:H]); f = jax.nn.sigmoid(g[:, H:2 * H])
        gg = jnp.tanh(g[:, 2 * H:3 * H]); o = jax.nn.sigmoid(g[:, 3 * H:4 * H])
        c2 = f * c + i * gg
        return o * jnp.tanh(c2), c2

    h = jnp.zeros((B, H), jnp.float32)
    c = jnp.zeros((B, H), jnp.float32)
    for t in range(S_in):
        h, c = cell(x[:, t, :], h, c,
                    params["enc_wih_t"], params["enc_whh_t"], params["enc_b"])
    dec_in = x[:, -1, :]
    outs = []
    for _ in range(seq_out):
        h, c = cell(dec_in, h, c,
                    params["dec_wih_t"], params["dec_whh_t"], params["dec_b"])
        y = h @ params["lin_w_t"] + params["lin_b"]
        outs.append(y)
        dec_in = y
    return jnp.stack(outs, axis=1)


if __name__ == "__main__":
    # Small shapes consistent with the module defaults.
    B, seq_in, seq_out = 2, 8, 4
    input_size, hidden_size = 16, 32

    key = jax.random.PRNGKey(0)
    kx, kp = jax.random.split(key)
    x = jax.random.normal(kx, (B, seq_in, input_size), jnp.float32)
    params = make_params(kp, input_size, hidden_size)

    out = enc_dec_lstm_forward(x, params, seq_out)
    out = jax.block_until_ready(out)

    ref = reference_forward(x, params, seq_out)
    assert out.shape == (B, seq_out, input_size)
    # Weight folding + the sigmoid-only tanh identity change summation/rounding
    # order slightly; still f32-exact to well within this tolerance.
    assert jnp.allclose(out, ref, atol=1e-4, rtol=1e-4), "mismatch vs reference"

    print("KERNEL_OK")
</pallas_src>

<mosaic_0001>
module attributes {stable_mosaic.version = 11 : i64} {
  func.func @kernel(%arg0: memref<16x16xf32, #tpu.memory_space<vmem>>, %arg1: memref<16x128xf32, #tpu.memory_space<vmem>>, %arg2: memref<32x128xf32, #tpu.memory_space<vmem>>, %arg3: memref<1x128xf32, #tpu.memory_space<vmem>>, %arg4: memref<16x128xf32, #tpu.memory_space<vmem>>, %arg5: memref<32x128xf32, #tpu.memory_space<vmem>>, %arg6: memref<32x128xf32, #tpu.memory_space<vmem>>, %arg7: memref<1x128xf32, #tpu.memory_space<vmem>>, %arg8: memref<1x128xf32, #tpu.memory_space<vmem>>, %arg9: memref<32x16xf32, #tpu.memory_space<vmem>>, %arg10: memref<1x16xf32, #tpu.memory_space<vmem>>, %arg11: memref<8x16xf32, #tpu.memory_space<vmem>>) attributes {dimension_semantics = [], scalar_prefetch = 0 : i64, scratch_operands = 0 : i64, tpu.core_type = #tpu.core_type<tc>} {
    %c0 = arith.constant 0 : index
    %c0_0 = arith.constant 0 : index
    %0 = vector.load %arg0[%c0, %c0_0] : memref<16x16xf32, #tpu.memory_space<vmem>>, vector<16x16xf32>
    %c0_1 = arith.constant 0 : index
    %c0_2 = arith.constant 0 : index
    %1 = vector.load %arg1[%c0_1, %c0_2] : memref<16x128xf32, #tpu.memory_space<vmem>>, vector<16x128xf32>
    %c0_3 = arith.constant 0 : index
    %c0_4 = arith.constant 0 : index
    %2 = vector.load %arg2[%c0_3, %c0_4] : memref<32x128xf32, #tpu.memory_space<vmem>>, vector<32x128xf32>
    %c0_5 = arith.constant 0 : index
    %c0_6 = arith.constant 0 : index
    %3 = vector.load %arg3[%c0_5, %c0_6] : memref<1x128xf32, #tpu.memory_space<vmem>>, vector<1x128xf32>
    %c0_7 = arith.constant 0 : index
    %c0_8 = arith.constant 0 : index
    %4 = vector.load %arg4[%c0_7, %c0_8] : memref<16x128xf32, #tpu.memory_space<vmem>>, vector<16x128xf32>
    %c0_9 = arith.constant 0 : index
    %c0_10 = arith.constant 0 : index
    %5 = vector.load %arg5[%c0_9, %c0_10] : memref<32x128xf32, #tpu.memory_space<vmem>>, vector<32x128xf32>
    %c0_11 = arith.constant 0 : index
    %c0_12 = arith.constant 0 : index
    %6 = vector.load %arg6[%c0_11, %c0_12] : memref<32x128xf32, #tpu.memory_space<vmem>>, vector<32x128xf32>
    %c0_13 = arith.constant 0 : index
    %c0_14 = arith.constant 0 : index
    %7 = vector.load %arg7[%c0_13, %c0_14] : memref<1x128xf32, #tpu.memory_space<vmem>>, vector<1x128xf32>
    %c0_15 = arith.constant 0 : index
    %c0_16 = arith.constant 0 : index
    %8 = vector.load %arg8[%c0_15, %c0_16] : memref<1x128xf32, #tpu.memory_space<vmem>>, vector<1x128xf32>
    %c0_17 = arith.constant 0 : index
    %c0_18 = arith.constant 0 : index
    %9 = vector.load %arg9[%c0_17, %c0_18] : memref<32x16xf32, #tpu.memory_space<vmem>>, vector<32x16xf32>
    %c0_19 = arith.constant 0 : index
    %c0_20 = arith.constant 0 : index
    %10 = vector.load %arg10[%c0_19, %c0_20] : memref<1x16xf32, #tpu.memory_space<vmem>>, vector<1x16xf32>
    %11 = tpu.iota {dimensions = array<i32: 1>} : vector<2x128xi32>
    %c64_i32 = arith.constant 64 : i32
    %12 = vector.broadcast %c64_i32 : i32 to vector<2x128xi32>
    %13 = arith.cmpi sge, %11, %12 : vector<2x128xi32>
    %c96_i32 = arith.constant 96 : i32
    %14 = vector.broadcast %c96_i32 : i32 to vector<2x128xi32>
    %15 = arith.cmpi slt, %11, %14 : vector<2x128xi32>
    %16 = arith.andi %13, %15 : vector<2x128xi1>
    %17 = vector.shape_cast %8 : vector<1x128xf32> to vector<1x128xf32>
    %18 = vector.broadcast %17 : vector<1x128xf32> to vector<2x128xf32>
    %19 = vector.shape_cast %10 : vector<1x16xf32> to vector<1x16xf32>
    %20 = vector.broadcast %19 : vector<1x16xf32> to vector<8x16xf32>
    %cst = arith.constant dense<0.000000e+00> : vector<16x128xf32>
    %21 = tpu.matmul %0, %1, %cst {dimension_numbers = #tpu.dot_dimension_numbers<[1], [0], [0], [1], [0, 0, 1, 1], [], []>} : vector<16x16xf32>, vector<16x128xf32>, vector<16x128xf32> -> vector<16x128xf32>
    %22 = vector.broadcast %3 : vector<1x128xf32> to vector<16x128xf32>
    %23 = arith.addf %21, %22 : vector<16x128xf32>
    %24 = vector.extract_strided_slice %0 {offsets = [14, 0], sizes = [2, 16], strides = [1, 1]} : vector<16x16xf32> to vector<2x16xf32>
    %cst_21 = arith.constant dense<0.000000e+00> : vector<2x128xf32>
    %25 = tpu.matmul %24, %4, %cst_21 {dimension_numbers = #tpu.dot_dimension_numbers<[1], [0], [0], [1], [0, 0, 1, 1], [], []>} : vector<2x16xf32>, vector<16x128xf32>, vector<2x128xf32> -> vector<2x128xf32>
    %26 = vector.shape_cast %7 : vector<1x128xf32> to vector<1x128xf32>
    %27 = vector.broadcast %26 : vector<1x128xf32> to vector<2x128xf32>
    %28 = arith.addf %25, %27 : vector<2x128xf32>
    %cst_22 = arith.constant 0.000000e+00 : f32
    %29 = vector.broadcast %cst_22 : f32 to vector<2x32xf32>
    %cst_23 = arith.constant 0.000000e+00 : f32
    %30 = vector.broadcast %cst_23 : f32 to vector<2x32xf32>
    %31 = vector.extract_strided_slice %23 {offsets = [0, 0], sizes = [2, 128], strides = [1, 1]} : vector<16x128xf32> to vector<2x128xf32>
    %cst_24 = arith.constant dense<0.000000e+00> : vector<2x128xf32>
    %32 = tpu.matmul %29, %2, %cst_24 {dimension_numbers = #tpu.dot_dimension_numbers<[1], [0], [0], [1], [0, 0, 1, 1], [], []>} : vector<2x32xf32>, vector<32x128xf32>, vector<2x128xf32> -> vector<2x128xf32>
    %33 = arith.addf %31, %32 : vector<2x128xf32>
    %34 = arith.addf %33, %33 : vector<2x128xf32>
    %35 = arith.select %16, %34, %33 : vector<2x128xi1>, vector<2x128xf32>
    %36 = arith.negf %35 : vector<2x128xf32>
    %37 = math.exp %36 : vector<2x128xf32>
    %cst_25 = arith.constant 1.000000e+00 : f32
    %38 = vector.broadcast %cst_25 : f32 to vector<2x128xf32>
    %39 = arith.addf %38, %37 : vector<2x128xf32>
    %40 = arith.divf %38, %39 : vector<2x128xf32>
    %41 = arith.addf %40, %40 : vector<2x128xf32>
    %cst_26 = arith.constant 1.000000e+00 : f32
    %42 = vector.broadcast %cst_26 : f32 to vector<2x128xf32>
    %43 = arith.subf %41, %42 : vector<2x128xf32>
    %44 = arith.select %16, %43, %40 : vector<2x128xi1>, vector<2x128xf32>
    %45 = vector.extract_strided_slice %44 {offsets = [0, 0], sizes = [2, 32], strides = [1, 1]} : vector<2x128xf32> to vector<2x32xf32>
    %46 = vector.extract_strided_slice %44 {offsets = [0, 32], sizes = [2, 32], strides = [1, 1]} : vector<2x128xf32> to vector<2x32xf32>
    %47 = vector.extract_strided_slice %44 {offsets = [0, 64], sizes = [2, 32], strides = [1, 1]} : vector<2x128xf32> to vector<2x32xf32>
    %48 = vector.extract_strided_slice %44 {offsets = [0, 96], sizes = [2, 32], strides = [1, 1]} : vector<2x128xf32> to vector<2x32xf32>
    %49 = arith.mulf %46, %30 : vector<2x32xf32>
    %50 = arith.mulf %45, %47 : vector<2x32xf32>
    %51 = arith.addf %49, %50 : vector<2x32xf32>
    %52 = math.tanh %51 : vector<2x32xf32>
    %53 = arith.mulf %48, %52 : vector<2x32xf32>
    %54 = vector.extract_strided_slice %23 {offsets = [2, 0], sizes = [2, 128], strides = [1, 1]} : vector<16x128xf32> to vector<2x128xf32>
    %cst_27 = arith.constant dense<0.000000e+00> : vector<2x128xf32>
    %55 = tpu.matmul %53, %2, %cst_27 {dimension_numbers = #tpu.dot_dimension_numbers<[1], [0], [0], [1], [0, 0, 1, 1], [], []>} : vector<2x32xf32>, vector<32x128xf32>, vector<2x128xf32> -> vector<2x128xf32>
    %56 = arith.addf %54, %55 : vector<2x128xf32>
    %57 = arith.addf %56, %56 : vector<2x128xf32>
    %58 = arith.select %16, %57, %56 : vector<2x128xi1>, vector<2x128xf32>
    %59 = arith.negf %58 : vector<2x128xf32>
    %60 = math.exp %59 : vector<2x128xf32>
    %cst_28 = arith.constant 1.000000e+00 : f32
    %61 = vector.broadcast %cst_28 : f32 to vector<2x128xf32>
    %62 = arith.addf %61, %60 : vector<2x128xf32>
    %63 = arith.divf %61, %62 : vector<2x128xf32>
    %64 = arith.addf %63, %63 : vector<2x128xf32>
    %cst_29 = arith.constant 1.000000e+00 : f32
    %65 = vector.broadcast %cst_29 : f32 to vector<2x128xf32>
    %66 = arith.subf %64, %65 : vector<2x128xf32>
    %67 = arith.select %16, %66, %63 : vector<2x128xi1>, vector<2x128xf32>
    %68 = vector.extract_strided_slice %67 {offsets = [0, 0], sizes = [2, 32], strides = [1, 1]} : vector<2x128xf32> to vector<2x32xf32>
    %69 = vector.extract_strided_slice %67 {offsets = [0, 32], sizes = [2, 32], strides = [1, 1]} : vector<2x128xf32> to vector<2x32xf32>
    %70 = vector.extract_strided_slice %67 {offsets = [0, 64], sizes = [2, 32], strides = [1, 1]} : vector<2x128xf32> to vector<2x32xf32>
    %71 = vector.extract_strided_slice %67 {offsets = [0, 96], sizes = [2, 32], strides = [1, 1]} : vector<2x128xf32> to vector<2x32xf32>
    %72 = arith.mulf %69, %51 : vector<2x32xf32>
    %73 = arith.mulf %68, %70 : vector<2x32xf32>
    %74 = arith.addf %72, %73 : vector<2x32xf32>
    %75 = math.tanh %74 : vector<2x32xf32>
    %76 = arith.mulf %71, %75 : vector<2x32xf32>
    %77 = vector.extract_strided_slice %23 {offsets = [4, 0], sizes = [2, 128], strides = [1, 1]} : vector<16x128xf32> to vector<2x128xf32>
    %cst_30 = arith.constant dense<0.000000e+00> : vector<2x128xf32>
    %78 = tpu.matmul %76, %2, %cst_30 {dimension_numbers = #tpu.dot_dimension_numbers<[1], [0], [0], [1], [0, 0, 1, 1], [], []>} : vector<2x32xf32>, vector<32x128xf32>, vector<2x128xf32> -> vector<2x128xf32>
    %79 = arith.addf %77, %78 : vector<2x128xf32>
    %80 = arith.addf %79, %79 : vector<2x128xf32>
    %81 = arith.select %16, %80, %79 : vector<2x128xi1>, vector<2x128xf32>
    %82 = arith.negf %81 : vector<2x128xf32>
    %83 = math.exp %82 : vector<2x128xf32>
    %cst_31 = arith.constant 1.000000e+00 : f32
    %84 = vector.broadcast %cst_31 : f32 to vector<2x128xf32>
    %85 = arith.addf %84, %83 : vector<2x128xf32>
    %86 = arith.divf %84, %85 : vector<2x128xf32>
    %87 = arith.addf %86, %86 : vector<2x128xf32>
    %cst_32 = arith.constant 1.000000e+00 : f32
    %88 = vector.broadcast %cst_32 : f32 to vector<2x128xf32>
    %89 = arith.subf %87, %88 : vector<2x128xf32>
    %90 = arith.select %16, %89, %86 : vector<2x128xi1>, vector<2x128xf32>
    %91 = vector.extract_strided_slice %90 {offsets = [0, 0], sizes = [2, 32], strides = [1, 1]} : vector<2x128xf32> to vector<2x32xf32>
    %92 = vector.extract_strided_slice %90 {offsets = [0, 32], sizes = [2, 32], strides = [1, 1]} : vector<2x128xf32> to vector<2x32xf32>
    %93 = vector.extract_strided_slice %90 {offsets = [0, 64], sizes = [2, 32], strides = [1, 1]} : vector<2x128xf32> to vector<2x32xf32>
    %94 = vector.extract_strided_slice %90 {offsets = [0, 96], sizes = [2, 32], strides = [1, 1]} : vector<2x128xf32> to vector<2x32xf32>
    %95 = arith.mulf %92, %74 : vector<2x32xf32>
    %96 = arith.mulf %91, %93 : vector<2x32xf32>
    %97 = arith.addf %95, %96 : vector<2x32xf32>
    %98 = math.tanh %97 : vector<2x32xf32>
    %99 = arith.mulf %94, %98 : vector<2x32xf32>
    %100 = vector.extract_strided_slice %23 {offsets = [6, 0], sizes = [2, 128], strides = [1, 1]} : vector<16x128xf32> to vector<2x128xf32>
    %cst_33 = arith.constant dense<0.000000e+00> : vector<2x128xf32>
    %101 = tpu.matmul %99, %2, %cst_33 {dimension_numbers = #tpu.dot_dimension_numbers<[1], [0], [0], [1], [0, 0, 1, 1], [], []>} : vector<2x32xf32>, vector<32x128xf32>, vector<2x128xf32> -> vector<2x128xf32>
    %102 = arith.addf %100, %101 : vector<2x128xf32>
    %103 = arith.addf %102, %102 : vector<2x128xf32>
    %104 = arith.select %16, %103, %102 : vector<2x128xi1>, vector<2x128xf32>
    %105 = arith.negf %104 : vector<2x128xf32>
    %106 = math.exp %105 : vector<2x128xf32>
    %cst_34 = arith.constant 1.000000e+00 : f32
    %107 = vector.broadcast %cst_34 : f32 to vector<2x128xf32>
    %108 = arith.addf %107, %106 : vector<2x128xf32>
    %109 = arith.divf %107, %108 : vector<2x128xf32>
    %110 = arith.addf %109, %109 : vector<2x128xf32>
    %cst_35 = arith.constant 1.000000e+00 : f32
    %111 = vector.broadcast %cst_35 : f32 to vector<2x128xf32>
    %112 = arith.subf %110, %111 : vector<2x128xf32>
    %113 = arith.select %16, %112, %109 : vector<2x128xi1>, vector<2x128xf32>
    %114 = vector.extract_strided_slice %113 {offsets = [0, 0], sizes = [2, 32], strides = [1, 1]} : vector<2x128xf32> to vector<2x32xf32>
    %115 = vector.extract_strided_slice %113 {offsets = [0, 32], sizes = [2, 32], strides = [1, 1]} : vector<2x128xf32> to vector<2x32xf32>
    %116 = vector.extract_strided_slice %113 {offsets = [0, 64], sizes = [2, 32], strides = [1, 1]} : vector<2x128xf32> to vector<2x32xf32>
    %117 = vector.extract_strided_slice %113 {offsets = [0, 96], sizes = [2, 32], strides = [1, 1]} : vector<2x128xf32> to vector<2x32xf32>
    %118 = arith.mulf %115, %97 : vector<2x32xf32>
    %119 = arith.mulf %114, %116 : vector<2x32xf32>
    %120 = arith.addf %118, %119 : vector<2x32xf32>
    %121 = math.tanh %120 : vector<2x32xf32>
    %122 = arith.mulf %117, %121 : vector<2x32xf32>
    %123 = vector.extract_strided_slice %23 {offsets = [8, 0], sizes = [2, 128], strides = [1, 1]} : vector<16x128xf32> to vector<2x128xf32>
    %cst_36 = arith.constant dense<0.000000e+00> : vector<2x128xf32>
    %124 = tpu.matmul %122, %2, %cst_36 {dimension_numbers = #tpu.dot_dimension_numbers<[1], [0], [0], [1], [0, 0, 1, 1], [], []>} : vector<2x32xf32>, vector<32x128xf32>, vector<2x128xf32> -> vector<2x128xf32>
    %125 = arith.addf %123, %124 : vector<2x128xf32>
    %126 = arith.addf %125, %125 : vector<2x128xf32>
    %127 = arith.select %16, %126, %125 : vector<2x128xi1>, vector<2x128xf32>
    %128 = arith.negf %127 : vector<2x128xf32>
    %129 = math.exp %128 : vector<2x128xf32>
    %cst_37 = arith.constant 1.000000e+00 : f32
    %130 = vector.broadcast %cst_37 : f32 to vector<2x128xf32>
    %131 = arith.addf %130, %129 : vector<2x128xf32>
    %132 = arith.divf %130, %131 : vector<2x128xf32>
    %133 = arith.addf %132, %132 : vector<2x128xf32>
    %cst_38 = arith.constant 1.000000e+00 : f32
    %134 = vector.broadcast %cst_38 : f32 to vector<2x128xf32>
    %135 = arith.subf %133, %134 : vector<2x128xf32>
    %136 = arith.select %16, %135, %132 : vector<2x128xi1>, vector<2x128xf32>
    %137 = vector.extract_strided_slice %136 {offsets = [0, 0], sizes = [2, 32], strides = [1, 1]} : vector<2x128xf32> to vector<2x32xf32>
    %138 = vector.extract_strided_slice %136 {offsets = [0, 32], sizes = [2, 32], strides = [1, 1]} : vector<2x128xf32> to vector<2x32xf32>
    %139 = vector.extract_strided_slice %136 {offsets = [0, 64], sizes = [2, 32], strides = [1, 1]} : vector<2x128xf32> to vector<2x32xf32>
    %140 = vector.extract_strided_slice %136 {offsets = [0, 96], sizes = [2, 32], strides = [1, 1]} : vector<2x128xf32> to vector<2x32xf32>
    %141 = arith.mulf %138, %120 : vector<2x32xf32>
    %142 = arith.mulf %137, %139 : vector<2x32xf32>
    %143 = arith.addf %141, %142 : vector<2x32xf32>
    %144 = math.tanh %143 : vector<2x32xf32>
    %145 = arith.mulf %140, %144 : vector<2x32xf32>
    %146 = vector.extract_strided_slice %23 {offsets = [10, 0], sizes = [2, 128], strides = [1, 1]} : vector<16x128xf32> to vector<2x128xf32>
    %cst_39 = arith.constant dense<0.000000e+00> : vector<2x128xf32>
    %147 = tpu.matmul %145, %2, %cst_39 {dimension_numbers = #tpu.dot_dimension_numbers<[1], [0], [0], [1], [0, 0, 1, 1], [], []>} : vector<2x32xf32>, vector<32x128xf32>, vector<2x128xf32> -> vector<2x128xf32>
    %148 = arith.addf %146, %147 : vector<2x128xf32>
    %149 = arith.addf %148, %148 : vector<2x128xf32>
    %150 = arith.select %16, %149, %148 : vector<2x128xi1>, vector<2x128xf32>
    %151 = arith.negf %150 : vector<2x128xf32>
    %152 = math.exp %151 : vector<2x128xf32>
    %cst_40 = arith.constant 1.000000e+00 : f32
    %153 = vector.broadcast %cst_40 : f32 to vector<2x128xf32>
    %154 = arith.addf %153, %152 : vector<2x128xf32>
    %155 = arith.divf %153, %154 : vector<2x128xf32>
    %156 = arith.addf %155, %155 : vector<2x128xf32>
    %cst_41 = arith.constant 1.000000e+00 : f32
    %157 = vector.broadcast %cst_41 : f32 to vector<2x128xf32>
    %158 = arith.subf %156, %157 : vector<2x128xf32>
    %159 = arith.select %16, %158, %155 : vector<2x128xi1>, vector<2x128xf32>
    %160 = vector.extract_strided_slice %159 {offsets = [0, 0], sizes = [2, 32], strides = [1, 1]} : vector<2x128xf32> to vector<2x32xf32>
    %161 = vector.extract_strided_slice %159 {offsets = [0, 32], sizes = [2, 32], strides = [1, 1]} : vector<2x128xf32> to vector<2x32xf32>
    %162 = vector.extract_strided_slice %159 {offsets = [0, 64], sizes = [2, 32], strides = [1, 1]} : vector<2x128xf32> to vector<2x32xf32>
    %163 = vector.extract_strided_slice %159 {offsets = [0, 96], sizes = [2, 32], strides = [1, 1]} : vector<2x128xf32> to vector<2x32xf32>
    %164 = arith.mulf %161, %143 : vector<2x32xf32>
    %165 = arith.mulf %160, %162 : vector<2x32xf32>
    %166 = arith.addf %164, %165 : vector<2x32xf32>
    %167 = math.tanh %166 : vector<2x32xf32>
    %168 = arith.mulf %163, %167 : vector<2x32xf32>
    %169 = vector.extract_strided_slice %23 {offsets = [12, 0], sizes = [2, 128], strides = [1, 1]} : vector<16x128xf32> to vector<2x128xf32>
    %cst_42 = arith.constant dense<0.000000e+00> : vector<2x128xf32>
    %170 = tpu.matmul %168, %2, %cst_42 {dimension_numbers = #tpu.dot_dimension_numbers<[1], [0], [0], [1], [0, 0, 1, 1], [], []>} : vector<2x32xf32>, vector<32x128xf32>, vector<2x128xf32> -> vector<2x128xf32>
    %171 = arith.addf %169, %170 : vector<2x128xf32>
    %172 = arith.addf %171, %171 : vector<2x128xf32>
    %173 = arith.select %16, %172, %171 : vector<2x128xi1>, vector<2x128xf32>
    %174 = arith.negf %173 : vector<2x128xf32>
    %175 = math.exp %174 : vector<2x128xf32>
    %cst_43 = arith.constant 1.000000e+00 : f32
    %176 = vector.broadcast %cst_43 : f32 to vector<2x128xf32>
    %177 = arith.addf %176, %175 : vector<2x128xf32>
    %178 = arith.divf %176, %177 : vector<2x128xf32>
    %179 = arith.addf %178, %178 : vector<2x128xf32>
    %cst_44 = arith.constant 1.000000e+00 : f32
    %180 = vector.broadcast %cst_44 : f32 to vector<2x128xf32>
    %181 = arith.subf %179, %180 : vector<2x128xf32>
    %182 = arith.select %16, %181, %178 : vector<2x128xi1>, vector<2x128xf32>
    %183 = vector.extract_strided_slice %182 {offsets = [0, 0], sizes = [2, 32], strides = [1, 1]} : vector<2x128xf32> to vector<2x32xf32>
    %184 = vector.extract_strided_slice %182 {offsets = [0, 32], sizes = [2, 32], strides = [1, 1]} : vector<2x128xf32> to vector<2x32xf32>
    %185 = vector.extract_strided_slice %182 {offsets = [0, 64], sizes = [2, 32], strides = [1, 1]} : vector<2x128xf32> to vector<2x32xf32>
    %186 = vector.extract_strided_slice %182 {offsets = [0, 96], sizes = [2, 32], strides = [1, 1]} : vector<2x128xf32> to vector<2x32xf32>
    %187 = arith.mulf %184, %166 : vector<2x32xf32>
    %188 = arith.mulf %183, %185 : vector<2x32xf32>
    %189 = arith.addf %187, %188 : vector<2x32xf32>
    %190 = math.tanh %189 : vector<2x32xf32>
    %191 = arith.mulf %186, %190 : vector<2x32xf32>
    %192 = vector.extract_strided_slice %23 {offsets = [14, 0], sizes = [2, 128], strides = [1, 1]} : vector<16x128xf32> to vector<2x128xf32>
    %cst_45 = arith.constant dense<0.000000e+00> : vector<2x128xf32>
    %193 = tpu.matmul %191, %2, %cst_45 {dimension_numbers = #tpu.dot_dimension_numbers<[1], [0], [0], [1], [0, 0, 1, 1], [], []>} : vector<2x32xf32>, vector<32x128xf32>, vector<2x128xf32> -> vector<2x128xf32>
    %194 = arith.addf %192, %193 : vector<2x128xf32>
    %195 = arith.addf %194, %194 : vector<2x128xf32>
    %196 = arith.select %16, %195, %194 : vector<2x128xi1>, vector<2x128xf32>
    %197 = arith.negf %196 : vector<2x128xf32>
    %198 = math.exp %197 : vector<2x128xf32>
    %cst_46 = arith.constant 1.000000e+00 : f32
    %199 = vector.broadcast %cst_46 : f32 to vector<2x128xf32>
    %200 = arith.addf %199, %198 : vector<2x128xf32>
    %201 = arith.divf %199, %200 : vector<2x128xf32>
    %202 = arith.addf %201, %201 : vector<2x128xf32>
    %cst_47 = arith.constant 1.000000e+00 : f32
    %203 = vector.broadcast %cst_47 : f32 to vector<2x128xf32>
    %204 = arith.subf %202, %203 : vector<2x128xf32>
    %205 = arith.select %16, %204, %201 : vector<2x128xi1>, vector<2x128xf32>
    %206 = vector.extract_strided_slice %205 {offsets = [0, 0], sizes = [2, 32], strides = [1, 1]} : vector<2x128xf32> to vector<2x32xf32>
    %207 = vector.extract_strided_slice %205 {offsets = [0, 32], sizes = [2, 32], strides = [1, 1]} : vector<2x128xf32> to vector<2x32xf32>
    %208 = vector.extract_strided_slice %205 {offsets = [0, 64], sizes = [2, 32], strides = [1, 1]} : vector<2x128xf32> to vector<2x32xf32>
    %209 = vector.extract_strided_slice %205 {offsets = [0, 96], sizes = [2, 32], strides = [1, 1]} : vector<2x128xf32> to vector<2x32xf32>
    %210 = arith.mulf %207, %189 : vector<2x32xf32>
    %211 = arith.mulf %206, %208 : vector<2x32xf32>
    %212 = arith.addf %210, %211 : vector<2x32xf32>
    %213 = math.tanh %212 : vector<2x32xf32>
    %214 = arith.mulf %209, %213 : vector<2x32xf32>
    %cst_48 = arith.constant dense<0.000000e+00> : vector<2x128xf32>
    %215 = tpu.matmul %214, %5, %cst_48 {dimension_numbers = #tpu.dot_dimension_numbers<[1], [0], [0], [1], [0, 0, 1, 1], [], []>} : vector<2x32xf32>, vector<32x128xf32>, vector<2x128xf32> -> vector<2x128xf32>
    %216 = arith.addf %28, %215 : vector<2x128xf32>
    %217 = arith.addf %216, %216 : vector<2x128xf32>
    %218 = arith.select %16, %217, %216 : vector<2x128xi1>, vector<2x128xf32>
    %219 = arith.negf %218 : vector<2x128xf32>
    %220 = math.exp %219 : vector<2x128xf32>
    %cst_49 = arith.constant 1.000000e+00 : f32
    %221 = vector.broadcast %cst_49 : f32 to vector<2x128xf32>
    %222 = arith.addf %221, %220 : vector<2x128xf32>
    %223 = arith.divf %221, %222 : vector<2x128xf32>
    %224 = arith.addf %223, %223 : vector<2x128xf32>
    %cst_50 = arith.constant 1.000000e+00 : f32
    %225 = vector.broadcast %cst_50 : f32 to vector<2x128xf32>
    %226 = arith.subf %224, %225 : vector<2x128xf32>
    %227 = arith.select %16, %226, %223 : vector<2x128xi1>, vector<2x128xf32>
    %228 = vector.extract_strided_slice %227 {offsets = [0, 0], sizes = [2, 32], strides = [1, 1]} : vector<2x128xf32> to vector<2x32xf32>
    %229 = vector.extract_strided_slice %227 {offsets = [0, 32], sizes = [2, 32], strides = [1, 1]} : vector<2x128xf32> to vector<2x32xf32>
    %230 = vector.extract_strided_slice %227 {offsets = [0, 64], sizes = [2, 32], strides = [1, 1]} : vector<2x128xf32> to vector<2x32xf32>
    %231 = vector.extract_strided_slice %227 {offsets = [0, 96], sizes = [2, 32], strides = [1, 1]} : vector<2x128xf32> to vector<2x32xf32>
    %232 = arith.mulf %229, %212 : vector<2x32xf32>
    %233 = arith.mulf %228, %230 : vector<2x32xf32>
    %234 = arith.addf %232, %233 : vector<2x32xf32>
    %235 = math.tanh %234 : vector<2x32xf32>
    %236 = arith.mulf %231, %235 : vector<2x32xf32>
    %cst_51 = arith.constant dense<0.000000e+00> : vector<2x128xf32>
    %237 = tpu.matmul %236, %6, %cst_51 {dimension_numbers = #tpu.dot_dimension_numbers<[1], [0], [0], [1], [0, 0, 1, 1], [], []>} : vector<2x32xf32>, vector<32x128xf32>, vector<2x128xf32> -> vector<2x128xf32>
    %238 = arith.addf %237, %18 : vector<2x128xf32>
    %239 = arith.addf %238, %238 : vector<2x128xf32>
    %240 = arith.select %16, %239, %238 : vector<2x128xi1>, vector<2x128xf32>
    %241 = arith.negf %240 : vector<2x128xf32>
    %242 = math.exp %241 : vector<2x128xf32>
    %cst_52 = arith.constant 1.000000e+00 : f32
    %243 = vector.broadcast %cst_52 : f32 to vector<2x128xf32>
    %244 = arith.addf %243, %242 : vector<2x128xf32>
    %245 = arith.divf %243, %244 : vector<2x128xf32>
    %246 = arith.addf %245, %245 : vector<2x128xf32>
    %cst_53 = arith.constant 1.000000e+00 : f32
    %247 = vector.broadcast %cst_53 : f32 to vector<2x128xf32>
    %248 = arith.subf %246, %247 : vector<2x128xf32>
    %249 = arith.select %16, %248, %245 : vector<2x128xi1>, vector<2x128xf32>
    %250 = vector.extract_strided_slice %249 {offsets = [0, 0], sizes = [2, 32], strides = [1, 1]} : vector<2x128xf32> to vector<2x32xf32>
    %251 = vector.extract_strided_slice %249 {offsets = [0, 32], sizes = [2, 32], strides = [1, 1]} : vector<2x128xf32> to vector<2x32xf32>
    %252 = vector.extract_strided_slice %249 {offsets = [0, 64], sizes = [2, 32], strides = [1, 1]} : vector<2x128xf32> to vector<2x32xf32>
    %253 = vector.extract_strided_slice %249 {offsets = [0, 96], sizes = [2, 32], strides = [1, 1]} : vector<2x128xf32> to vector<2x32xf32>
    %254 = arith.mulf %251, %234 : vector<2x32xf32>
    %255 = arith.mulf %250, %252 : vector<2x32xf32>
    %256 = arith.addf %254, %255 : vector<2x32xf32>
    %257 = math.tanh %256 : vector<2x32xf32>
    %258 = arith.mulf %253, %257 : vector<2x32xf32>
    %cst_54 = arith.constant dense<0.000000e+00> : vector<2x128xf32>
    %259 = tpu.matmul %258, %6, %cst_54 {dimension_numbers = #tpu.dot_dimension_numbers<[1], [0], [0], [1], [0, 0, 1, 1], [], []>} : vector<2x32xf32>, vector<32x128xf32>, vector<2x128xf32> -> vector<2x128xf32>
    %260 = arith.addf %259, %18 : vector<2x128xf32>
    %261 = arith.addf %260, %260 : vector<2x128xf32>
    %262 = arith.select %16, %261, %260 : vector<2x128xi1>, vector<2x128xf32>
    %263 = arith.negf %262 : vector<2x128xf32>
    %264 = math.exp %263 : vector<2x128xf32>
    %cst_55 = arith.constant 1.000000e+00 : f32
    %265 = vector.broadcast %cst_55 : f32 to vector<2x128xf32>
    %266 = arith.addf %265, %264 : vector<2x128xf32>
    %267 = arith.divf %265, %266 : vector<2x128xf32>
    %268 = arith.addf %267, %267 : vector<2x128xf32>
    %cst_56 = arith.constant 1.000000e+00 : f32
    %269 = vector.broadcast %cst_56 : f32 to vector<2x128xf32>
    %270 = arith.subf %268, %269 : vector<2x128xf32>
    %271 = arith.select %16, %270, %267 : vector<2x128xi1>, vector<2x128xf32>
    %272 = vector.extract_strided_slice %271 {offsets = [0, 0], sizes = [2, 32], strides = [1, 1]} : vector<2x128xf32> to vector<2x32xf32>
    %273 = vector.extract_strided_slice %271 {offsets = [0, 32], sizes = [2, 32], strides = [1, 1]} : vector<2x128xf32> to vector<2x32xf32>
    %274 = vector.extract_strided_slice %271 {offsets = [0, 64], sizes = [2, 32], strides = [1, 1]} : vector<2x128xf32> to vector<2x32xf32>
    %275 = vector.extract_strided_slice %271 {offsets = [0, 96], sizes = [2, 32], strides = [1, 1]} : vector<2x128xf32> to vector<2x32xf32>
    %276 = arith.mulf %273, %256 : vector<2x32xf32>
    %277 = arith.mulf %272, %274 : vector<2x32xf32>
    %278 = arith.addf %276, %277 : vector<2x32xf32>
    %279 = math.tanh %278 : vector<2x32xf32>
    %280 = arith.mulf %275, %279 : vector<2x32xf32>
    %cst_57 = arith.constant dense<0.000000e+00> : vector<2x128xf32>
    %281 = tpu.matmul %280, %6, %cst_57 {dimension_numbers = #tpu.dot_dimension_numbers<[1], [0], [0], [1], [0, 0, 1, 1], [], []>} : vector<2x32xf32>, vector<32x128xf32>, vector<2x128xf32> -> vector<2x128xf32>
    %282 = arith.addf %281, %18 : vector<2x128xf32>
    %283 = arith.addf %282, %282 : vector<2x128xf32>
    %284 = arith.select %16, %283, %282 : vector<2x128xi1>, vector<2x128xf32>
    %285 = arith.negf %284 : vector<2x128xf32>
    %286 = math.exp %285 : vector<2x128xf32>
    %cst_58 = arith.constant 1.000000e+00 : f32
    %287 = vector.broadcast %cst_58 : f32 to vector<2x128xf32>
    %288 = arith.addf %287, %286 : vector<2x128xf32>
    %289 = arith.divf %287, %288 : vector<2x128xf32>
    %290 = arith.addf %289, %289 : vector<2x128xf32>
    %cst_59 = arith.constant 1.000000e+00 : f32
    %291 = vector.broadcast %cst_59 : f32 to vector<2x128xf32>
    %292 = arith.subf %290, %291 : vector<2x128xf32>
    %293 = arith.select %16, %292, %289 : vector<2x128xi1>, vector<2x128xf32>
    %294 = vector.extract_strided_slice %293 {offsets = [0, 0], sizes = [2, 32], strides = [1, 1]} : vector<2x128xf32> to vector<2x32xf32>
    %295 = vector.extract_strided_slice %293 {offsets = [0, 32], sizes = [2, 32], strides = [1, 1]} : vector<2x128xf32> to vector<2x32xf32>
    %296 = vector.extract_strided_slice %293 {offsets = [0, 64], sizes = [2, 32], strides = [1, 1]} : vector<2x128xf32> to vector<2x32xf32>
    %297 = vector.extract_strided_slice %293 {offsets = [0, 96], sizes = [2, 32], strides = [1, 1]} : vector<2x128xf32> to vector<2x32xf32>
    %298 = arith.mulf %295, %278 : vector<2x32xf32>
    %299 = arith.mulf %294, %296 : vector<2x32xf32>
    %300 = arith.addf %298, %299 : vector<2x32xf32>
    %301 = math.tanh %300 : vector<2x32xf32>
    %302 = arith.mulf %297, %301 : vector<2x32xf32>
    %303 = tpu.concatenate %236, %258, %280, %302 in 0 : vector<2x32xf32>, vector<2x32xf32>, vector<2x32xf32>, vector<2x32xf32> -> vector<8x32xf32>
    %cst_60 = arith.constant dense<0.000000e+00> : vector<8x16xf32>
    %304 = tpu.matmul %303, %9, %cst_60 {dimension_numbers = #tpu.dot_dimension_numbers<[1], [0], [0], [1], [0, 0, 1, 1], [], []>} : vector<8x32xf32>, vector<32x16xf32>, vector<8x16xf32> -> vector<8x16xf32>
    %305 = arith.addf %304, %20 : vector<8x16xf32>
    %c0_61 = arith.constant 0 : index
    %c0_62 = arith.constant 0 : index
    %306 = vector.load %arg11[%c0_61, %c0_62] : memref<8x16xf32, #tpu.memory_space<vmem>>, vector<8x16xf32>
    tpu.vector_store %arg11[%c0_61, %c0_62], %305 {strides = array<i32>} : memref<8x16xf32, #tpu.memory_space<vmem>>, vector<8x16xf32>,
    return
  }
}

</mosaic_0001>

<llo_original>
// kernel: tpu_custom_call.1
$region0: #{tpu_custom_call.1}
  #allocation0 [shape = 'u32[]', space=smem, size = 0x4, offset = 0x4, fixed_abs, tag = 'smem constant byte address 0x4 - core index']
  #allocation1 [shape = 'u32[144,128]{1,0:T(1,128)}', space=vmem, size = 0x12000, scoped, tag = 'internal scratch']
  %s0 = inlined_call_operand.hbm [shape: f32[16,16], index: 0, kind: input, shape index: {}]
  %s1 = inlined_call_operand.hbm [shape: f32[16,128], index: 1, kind: input, shape index: {}]
  %s2 = inlined_call_operand.vmem [shape: f32[32,128], index: 2, kind: input, shape index: {}]
  %s3 = inlined_call_operand.vmem [shape: f32[1,128], index: 3, kind: input, shape index: {}]
  %s4 = inlined_call_operand.hbm [shape: f32[16,128], index: 4, kind: input, shape index: {}]
  %s5 = inlined_call_operand.vmem [shape: f32[32,128], index: 5, kind: input, shape index: {}]
  %s6 = inlined_call_operand.hbm [shape: f32[32,128], index: 6, kind: input, shape index: {}]
  %s7 = inlined_call_operand.vmem [shape: f32[1,128], index: 7, kind: input, shape index: {}]
  %s8 = inlined_call_operand.hbm [shape: f32[1,128], index: 8, kind: input, shape index: {}]
  %s9 = inlined_call_operand.vmem [shape: f32[32,16], index: 9, kind: input, shape index: {}]
  %s10 = inlined_call_operand.vmem [shape: f32[1,16], index: 10, kind: input, shape index: {}]
  %s11 = inlined_call_operand.hbm [shape: f32[8,16], index: 11, kind: output, shape index: {}]
  %s12 = sld [smem:[#allocation0]]
  $region74: #{tpu_custom_call.1} parent=0
    _
  %s14 = ssub.s32 1, %s12
  %s15 = scalar_select 0, %s14, %s12
  $region1: #{tpu_custom_call.1} parent=0
    #allocation2 [shape = 'u8[8192]{0}', space=vmem, size = 0x2000, scoped, tag = 'input window, operand 0, single buffered']
    #allocation3 [shape = 's32[1]{0}', space=sflag, size = 0x4, scoped, tag = 'scoped memory for tpu_custom_call.1']
    #allocation4 [shape = 's32[1]{0}', space=sflag, size = 0x4, scoped, tag = 'scoped memory for tpu_custom_call.1']
    #allocation5 [shape = 'u8[8192]{0}', space=vmem, size = 0x2000, scoped, tag = 'input window, operand 1, single buffered']
    #allocation6 [shape = 's32[1]{0}', space=sflag, size = 0x4, scoped, tag = 'scoped memory for tpu_custom_call.1']
    #allocation7 [shape = 'u8[8192]{0}', space=vmem, size = 0x2000, scoped, tag = 'input window, operand 4, single buffered']
    #allocation8 [shape = 'u8[16384]{0}', space=vmem, size = 0x4000, scoped, tag = 'input window, operand 6, single buffered']
    #allocation9 [shape = 's32[1]{0}', space=sflag, size = 0x4, scoped, tag = 'scoped memory for tpu_custom_call.1']
    #allocation10 [shape = 'u8[512]{0}', space=vmem, size = 0x400, scoped, tag = 'input window, operand 8, single buffered']
    #allocation11 [shape = 'u8[4096]{0}', space=vmem, size = 0x1000, scoped, tag = 'output window, operand 0, single buffered']
    %16 = vsyncpa [#allocation3], 0
    %17 = vsyncpa [#allocation6], 0
    %18 = vsyncpa [#allocation9], 0
    %19 = vsyncpa [#allocation4], 0
    // Predicated region
    $region2: #{tpu_custom_call.1} parent=1 // pred_check
      _
    $region3: #{tpu_custom_call.1} parent=1 // pred_check_branch
      %21 = sbr.rel (0) target = $region5
    $region4: #{tpu_custom_call.1} parent=1 // pred_region
      %s23 = ssub.s32 256, 256
      %24 = vsyncadd [#allocation3], %s23
      %s25 = sshll.u32 [#allocation2], 4
      %s26 = int_to_ptr.vmem [resolvable:$true] %s25
      %31 = dma.hbm_to_vmem [thread:$0]  %s0, 256, %s26, [#allocation3], 128, 128, 8
    $region5: #{tpu_custom_call.1} parent=1 // pred_fallthru
      _
    // Predicated region
    $region6: #{tpu_custom_call.1} parent=1 // pred_check
      _
    $region7: #{tpu_custom_call.1} parent=1 // pred_check_branch
      %33 = sbr.rel (0) target = $region9
    $region8: #{tpu_custom_call.1} parent=1 // pred_region
      %s35 = ssub.s32 256, 256
      %36 = vsyncadd [#allocation6], %s35
      %s37 = sshll.u32 [#allocation5], 4
      %s38 = int_to_ptr.vmem [resolvable:$true] %s37
      %43 = dma.hbm_to_vmem [thread:$0]  %s1, 256, %s38, [#allocation6], 128, 128, 8
    $region9: #{tpu_custom_call.1} parent=1 // pred_fallthru
      _
    // Predicated region
    $region10: #{tpu_custom_call.1} parent=1 // pred_check
      _
    $region11: #{tpu_custom_call.1} parent=1 // pred_check_branch
      %45 = sbr.rel (0) target = $region13
    $region12: #{tpu_custom_call.1} parent=1 // pred_region
      _
    $region13: #{tpu_custom_call.1} parent=1 // pred_fallthru
      _
    // Predicated region
    $region14: #{tpu_custom_call.1} parent=1 // pred_check
      _
    $region15: #{tpu_custom_call.1} parent=1 // pred_check_branch
      %47 = sbr.rel (0) target = $region17
    $region16: #{tpu_custom_call.1} parent=1 // pred_region
      _
    $region17: #{tpu_custom_call.1} parent=1 // pred_fallthru
      _
    // Predicated region
    $region18: #{tpu_custom_call.1} parent=1 // pred_check
      _
    $region19: #{tpu_custom_call.1} parent=1 // pred_check_branch
      %49 = sbr.rel (0) target = $region21
    $region20: #{tpu_custom_call.1} parent=1 // pred_region
      %s51 = ssub.s32 256, 256
      %52 = vsyncadd [#allocation6], %s51
      %s53 = sshll.u32 [#allocation7], 4
      %s54 = int_to_ptr.vmem [resolvable:$true] %s53
      %59 = dma.hbm_to_vmem [thread:$0]  %s4, 256, %s54, [#allocation6], 128, 128, 8
    $region21: #{tpu_custom_call.1} parent=1 // pred_fallthru
      _
    // Predicated region
    $region22: #{tpu_custom_call.1} parent=1 // pred_check
      _
    $region23: #{tpu_custom_call.1} parent=1 // pred_check_branch
      %61 = sbr.rel (0) target = $region25
    $region24: #{tpu_custom_call.1} parent=1 // pred_region
      _
    $region25: #{tpu_custom_call.1} parent=1 // pred_fallthru
      _
    // Predicated region
    $region26: #{tpu_custom_call.1} parent=1 // pred_check
      _
    $region27: #{tpu_custom_call.1} parent=1 // pred_check_branch
      %63 = sbr.rel (0) target = $region29
    $region28: #{tpu_custom_call.1} parent=1 // pred_region
      %s65 = ssub.s32 512, 512
      %66 = vsyncadd [#allocation9], %s65
      %s67 = sshll.u32 [#allocation8], 4
      %s68 = int_to_ptr.vmem [resolvable:$true] %s67
      %73 = dma.hbm_to_vmem [thread:$0]  %s6, 512, %s68, [#allocation9], 128, 128, 8
    $region29: #{tpu_custom_call.1} parent=1 // pred_fallthru
      _
    // Predicated region
    $region30: #{tpu_custom_call.1} parent=1 // pred_check
      _
    $region31: #{tpu_custom_call.1} parent=1 // pred_check_branch
      %75 = sbr.rel (0) target = $region33
    $region32: #{tpu_custom_call.1} parent=1 // pred_region
      _
    $region33: #{tpu_custom_call.1} parent=1 // pred_fallthru
      _
    // Predicated region
    $region34: #{tpu_custom_call.1} parent=1 // pred_check
      _
    $region35: #{tpu_custom_call.1} parent=1 // pred_check_branch
      %77 = sbr.rel (0) target = $region37
    $region36: #{tpu_custom_call.1} parent=1 // pred_region
      %s79 = ssub.s32 16, 16
      %80 = vsyncadd [#allocation9], %s79
      %s82 = sshll.u32 [#allocation10], 4
      %s83 = int_to_ptr.vmem [resolvable:$true] %s82
      %85 = dma.hbm_to_vmem [thread:$0]  %s8, 16, %s83, [#allocation9]
    $region37: #{tpu_custom_call.1} parent=1 // pred_fallthru
      _
    // Predicated region
    $region38: #{tpu_custom_call.1} parent=1 // pred_check
      _
    $region39: #{tpu_custom_call.1} parent=1 // pred_check_branch
      %87 = sbr.rel (0) target = $region41
    $region40: #{tpu_custom_call.1} parent=1 // pred_region
      _
    $region41: #{tpu_custom_call.1} parent=1 // pred_fallthru
      _
    // Predicated region
    $region42: #{tpu_custom_call.1} parent=1 // pred_check
      _
    $region43: #{tpu_custom_call.1} parent=1 // pred_check_branch
      %89 = sbr.rel (0) target = $region45
    $region44: #{tpu_custom_call.1} parent=1 // pred_region
      _
    $region45: #{tpu_custom_call.1} parent=1 // pred_fallthru
      _
    // Predicated region
    $region46: #{tpu_custom_call.1} parent=1 // pred_check
      _
    $region47: #{tpu_custom_call.1} parent=1 // pred_check_branch
      %91 = sbr.rel (0) target = $region49
    $region48: #{tpu_custom_call.1} parent=1 // pred_region
      %92 = dma.done [#allocation3], 256
    $region49: #{tpu_custom_call.1} parent=1 // pred_fallthru
      _
    // Predicated region
    $region50: #{tpu_custom_call.1} parent=1 // pred_check
      _
    $region51: #{tpu_custom_call.1} parent=1 // pred_check_branch
      %94 = sbr.rel (0) target = $region53
    $region52: #{tpu_custom_call.1} parent=1 // pred_region
      %95 = dma.done [#allocation6], 256
    $region53: #{tpu_custom_call.1} parent=1 // pred_fallthru
      _
    // Predicated region
    $region54: #{tpu_custom_call.1} parent=1 // pred_check
      _
    $region55: #{tpu_custom_call.1} parent=1 // pred_check_branch
      %97 = sbr.rel (0) target = $region57
    $region56: #{tpu_custom_call.1} parent=1 // pred_region
      %98 = dma.done [#allocation6], 256
    $region57: #{tpu_custom_call.1} parent=1 // pred_fallthru
      _
    // Predicated region
    $region58: #{tpu_custom_call.1} parent=1 // pred_check
      _
    $region59: #{tpu_custom_call.1} parent=1 // pred_check_branch
      %100 = sbr.rel (0) target = $region61
    $region60: #{tpu_custom_call.1} parent=1 // pred_region
      %101 = dma.done [#allocation9], 512
    $region61: #{tpu_custom_call.1} parent=1 // pred_fallthru
      _
    // Predicated region
    $region62: #{tpu_custom_call.1} parent=1 // pred_check
      _
    $region63: #{tpu_custom_call.1} parent=1 // pred_check_branch
      %103 = sbr.rel (0) target = $region65
    $region64: #{tpu_custom_call.1} parent=1 // pred_region
      %104 = dma.done [#allocation9], 16
    $region65: #{tpu_custom_call.1} parent=1 // pred_fallthru
      _
    %v105 = vld [vmem:[#allocation2] sm:$0xff]
    %v106 = vld [vmem:[#allocation2 + $0x8] sm:$0xff]
    %v107 = vld [vmem:[#allocation5] sm:$0xff]
    %v108 = vld [vmem:[#allocation5 + $0x8] sm:$0xff]
    %v109 = vld [vmem:[%s2] sm:$0xff]
    %v110 = vld [vmem:[%s2 + $0x8] sm:$0xff]
    %v111 = vld [vmem:[%s2 + $0x10] sm:$0xff]
    %v112 = vld [vmem:[%s2 + $0x18] sm:$0xff]
    %v113 = vld [vmem:[%s3] sm:$0x1]
    %v114 = vld [vmem:[#allocation7] sm:$0xff]
    %v115 = vld [vmem:[#allocation7 + $0x8] sm:$0xff]
    %v116 = vld [vmem:[%s5] sm:$0xff]
    %v117 = vld [vmem:[%s5 + $0x8] sm:$0xff]
    %v118 = vld [vmem:[%s5 + $0x10] sm:$0xff]
    %v119 = vld [vmem:[%s5 + $0x18] sm:$0xff]
    %v120 = vld [vmem:[#allocation8] sm:$0xff]
    %v121 = vld [vmem:[#allocation8 + $0x8] sm:$0xff]
    %v122 = vld [vmem:[#allocation8 + $0x10] sm:$0xff]
    %v123 = vld [vmem:[#allocation8 + $0x18] sm:$0xff]
    %v124 = vld [vmem:[%s7] sm:$0x1]
    %v125 = vld [vmem:[#allocation10] sm:$0x1]
    %v126 = vld [vmem:[%s9] sm:$0xff]
    %v127 = vld [vmem:[%s9 + $0x8] sm:$0xff]
    %v128 = vld [vmem:[%s9 + $0x10] sm:$0xff]
    %v129 = vld [vmem:[%s9 + $0x18] sm:$0xff]
    %v130 = vld [vmem:[%s10] sm:$0x1]
    %v131 = vlaneseq
    %v132 = vand.u32 %v131, 127
    %vm133 = vcmp.ge.s32.totalorder %v132, 64
    %vm134 = vcmp.lt.s32.totalorder %v132, 96
    %vm135 = vmand %vm133, %vm134
    %v137 = vlaneseq
    %v138 = vshrl.u32 %v137, 7
    %v139 = vsub.s32 0, %v138
    %v140 = vrot.slane %v125, %v139
    %v143 = vlaneseq
    %v144 = vshrl.u32 %v143, 7
    %v145 = vsub.s32 0, %v144
    %v146 = vrot.slane %v130, %v145
    %v149 = vlaneseq
    %v150 = vshrl.u32 %v149, 7
    %v151 = vsub.s32 0, %v150
    %v152 = vrot.slane %v113, %v151
    %vm154 = vcmask 130048
    %v156 = vsel %vm154, %v105, 0
    %v159 = vsel %vm154, %v106, 0
    %161 = vmatprep.subr.mxu0 0.0
    %162 = vmatpush1.msra.mxu0 %v107
    %163 = vmatprep.subr.mxu0 0.0
    %164 = vmatpush1.msra.mxu0 %v108
    %165 = vmatprep.subr.mxu0 0.0
    %166 = vmatpush1.msra.mxu0 0.0
    %167 = vmatprep.subr.mxu0 0.0
    %168 = vmatpush1.msra.mxu0 0.0
    %169 = vmatprep.subr.mxu0 0.0
    %170 = vmatpush1.msra.mxu0 0.0
    %171 = vmatprep.subr.mxu0 0.0
    %172 = vmatpush1.msra.mxu0 0.0
    %173 = vmatprep.subr.mxu0 0.0
    %174 = vmatpush1.msra.mxu0 0.0
    %175 = vmatprep.subr.mxu0 0.0
    %176 = vmatpush1.msra.mxu0 0.0
    %177 = vmatprep.subr.mxu0 0.0
    %178 = vmatpush1.msra.mxu0 0.0
    %179 = vmatprep.subr.mxu0 0.0
    %180 = vmatpush1.msra.mxu0 0.0
    %181 = vmatprep.subr.mxu0 0.0
    %182 = vmatpush1.msra.mxu0 0.0
    %183 = vmatprep.subr.mxu0 0.0
    %184 = vmatpush1.msra.mxu0 0.0
    %185 = vmatprep.subr.mxu0 0.0
    %186 = vmatpush1.msra.mxu0 0.0
    %187 = vmatprep.subr.mxu0 0.0
    %188 = vmatpush1.msra.mxu0 0.0
    %189 = vmatprep.subr.mxu0 0.0
    %190 = vmatpush1.msra.mxu0 0.0
    %191 = vmatprep.subr.mxu0 0.0
    %192 = vmatpush1.msra.mxu0 0.0
    %193 = vmatprep.subr.mxu0 0.0
    %194 = vmatpush1.msra.mxu0 0.0
    %195 = vmatprep.subr.mxu0 0.0
    %196 = vmatpush1.msra.mxu0 0.0
    %197 = vmatprep.subr.mxu0 0.0
    %198 = vmatpush1.msra.mxu0 0.0
    %199 = vmatprep.subr.mxu0 0.0
    %200 = vmatpush1.msra.mxu0 0.0
    %201 = vmatprep.subr.mxu0 0.0
    %202 = vmatpush1.msra.mxu0 0.0
    %203 = vmatprep.subr.mxu0 0.0
    %204 = vmatpush1.msra.mxu0 0.0
    %205 = vmatprep.subr.mxu0 0.0
    %206 = vmatpush1.msra.mxu0 0.0
    %207 = vmatprep.subr.mxu0 0.0
    %208 = vmatpush1.msra.mxu0 0.0
    %209 = vmatprep.subr.mxu0 0.0
    %210 = vmatpush1.msra.mxu0 0.0
    %211 = vmatprep.subr.mxu0 0.0
    %212 = vmatpush1.msra.mxu0 0.0
    %213 = vmatprep.subr.mxu0 0.0
    %214 = vmatpush1.msra.mxu0 0.0
    %215 = vmatprep.subr.mxu0 0.0
    %216 = vmatpush1.msra.mxu0 0.0
    %217 = vmatprep.subr.mxu0 0.0
    %218 = vmatpush1.msra.mxu0 0.0
    %219 = vmatprep.subr.mxu0 0.0
    %220 = vmatpush1.msra.mxu0 0.0
    %221 = vmatprep.subr.mxu0 0.0
    %222 = vmatpush1.msra.mxu0 0.0
    %223 = vmatprep.subr.mxu0 0.0
    %224 = vmatpush1.msra.mxu0 0.0
    %225 = vmatprep.mubr.f32.mxu0 0.0
    %226 = vmatmul.mubr.f32.gmra.mrb[0].mxu0 %v156
    %v227 = vpop.f32.mrb[0].mxu0
    %v228 = vadd.f32 %v152, %v227
    %v229 = vpop.f32.mrb[0].mxu0
    %230 = vmatprep.mubr.f32.mxu0 0.0
    %231 = vmatmul.mubr.f32.gmra.mrb[0].mxu0 %v159
    %v232 = vpop.f32.mrb[0].mxu0
    %v233 = vadd.f32 %v152, %v232
    %v234 = vpop.f32.mrb[0].mxu0
    %235 = vdwg.mxu0
    %v237 = vlaneseq
    %v238 = vshrl.u32 %v237, 7
    %v239 = vsub.s32 0, %v238
    %v240 = vrot.slane %v124, %v239
    %v242 = vrot.slane %v106, 6
    %v243 = vsel %vm154, %v242, 0
    %245 = vmatprep.subr.mxu0 0.0
    %246 = vmatpush1.msra.mxu0 %v114
    %247 = vmatprep.subr.mxu0 0.0
    %248 = vmatpush1.msra.mxu0 %v115
    %249 = vmatprep.subr.mxu0 0.0
    %250 = vmatpush1.msra.mxu0 0.0
    %251 = vmatprep.subr.mxu0 0.0
    %252 = vmatpush1.msra.mxu0 0.0
    %253 = vmatprep.subr.mxu0 0.0
    %254 = vmatpush1.msra.mxu0 0.0
    %255 = vmatprep.subr.mxu0 0.0
    %256 = vmatpush1.msra.mxu0 0.0
    %257 = vmatprep.subr.mxu0 0.0
    %258 = vmatpush1.msra.mxu0 0.0
    %259 = vmatprep.subr.mxu0 0.0
    %260 = vmatpush1.msra.mxu0 0.0
    %261 = vmatprep.subr.mxu0 0.0
    %262 = vmatpush1.msra.mxu0 0.0
    %263 = vmatprep.subr.mxu0 0.0
    %264 = vmatpush1.msra.mxu0 0.0
    %265 = vmatprep.subr.mxu0 0.0
    %266 = vmatpush1.msra.mxu0 0.0
    %267 = vmatprep.subr.mxu0 0.0
    %268 = vmatpush1.msra.mxu0 0.0
    %269 = vmatprep.subr.mxu0 0.0
    %270 = vmatpush1.msra.mxu0 0.0
    %271 = vmatprep.subr.mxu0 0.0
    %272 = vmatpush1.msra.mxu0 0.0
    %273 = vmatprep.subr.mxu0 0.0
    %274 = vmatpush1.msra.mxu0 0.0
    %275 = vmatprep.subr.mxu0 0.0
    %276 = vmatpush1.msra.mxu0 0.0
    %277 = vmatprep.subr.mxu0 0.0
    %278 = vmatpush1.msra.mxu0 0.0
    %279 = vmatprep.subr.mxu0 0.0
    %280 = vmatpush1.msra.mxu0 0.0
    %281 = vmatprep.subr.mxu0 0.0
    %282 = vmatpush1.msra.mxu0 0.0
    %283 = vmatprep.subr.mxu0 0.0
    %284 = vmatpush1.msra.mxu0 0.0
    %285 = vmatprep.subr.mxu0 0.0
    %286 = vmatpush1.msra.mxu0 0.0
    %287 = vmatprep.subr.mxu0 0.0
    %288 = vmatpush1.msra.mxu0 0.0
    %289 = vmatprep.subr.mxu0 0.0
    %290 = vmatpush1.msra.mxu0 0.0
    %291 = vmatprep.subr.mxu0 0.0
    %292 = vmatpush1.msra.mxu0 0.0
    %293 = vmatprep.subr.mxu0 0.0
    %294 = vmatpush1.msra.mxu0 0.0
    %295 = vmatprep.subr.mxu0 0.0
    %296 = vmatpush1.msra.mxu0 0.0
    %297 = vmatprep.subr.mxu0 0.0
    %298 = vmatpush1.msra.mxu0 0.0
    %299 = vmatprep.subr.mxu0 0.0
    %300 = vmatpush1.msra.mxu0 0.0
    %301 = vmatprep.subr.mxu0 0.0
    %302 = vmatpush1.msra.mxu0 0.0
    %303 = vmatprep.subr.mxu0 0.0
    %304 = vmatpush1.msra.mxu0 0.0
    %305 = vmatprep.subr.mxu0 0.0
    %306 = vmatpush1.msra.mxu0 0.0
    %307 = vmatprep.subr.mxu0 0.0
    %308 = vmatpush1.msra.mxu0 0.0
    %309 = vmatprep.mubr.f32.mxu0 0.0
    %310 = vmatmul.mubr.f32.gmra.mrb[0].mxu0 %v243
    %v311 = vpop.f32.mrb[0].mxu0
    %v312 = vadd.f32 %v240, %v311
    %v313 = vpop.f32.mrb[0].mxu0
    %314 = vdwg.mxu0
    %vm315 = vcmask 261120
    %v317 = vsel %vm315, 0.0, 0
    %319 = vmatprep.subr.mxu0 0.0
    %320 = vmatpush1.msra.mxu0 %v109
    %321 = vmatprep.subr.mxu0 0.0
    %322 = vmatpush1.msra.mxu0 %v110
    %323 = vmatprep.subr.mxu0 0.0
    %324 = vmatpush1.msra.mxu0 %v111
    %325 = vmatprep.subr.mxu0 0.0
    %326 = vmatpush1.msra.mxu0 %v112
    %327 = vmatprep.subr.mxu0 0.0
    %328 = vmatpush1.msra.mxu0 0.0
    %329 = vmatprep.subr.mxu0 0.0
    %330 = vmatpush1.msra.mxu0 0.0
    %331 = vmatprep.subr.mxu0 0.0
    %332 = vmatpush1.msra.mxu0 0.0
    %333 = vmatprep.subr.mxu0 0.0
    %334 = vmatpush1.msra.mxu0 0.0
    %335 = vmatprep.subr.mxu0 0.0
    %336 = vmatpush1.msra.mxu0 0.0
    %337 = vmatprep.subr.mxu0 0.0
    %338 = vmatpush1.msra.mxu0 0.0
    %339 = vmatprep.subr.mxu0 0.0
    %340 = vmatpush1.msra.mxu0 0.0
    %341 = vmatprep.subr.mxu0 0.0
    %342 = vmatpush1.msra.mxu0 0.0
    %343 = vmatprep.subr.mxu0 0.0
    %344 = vmatpush1.msra.mxu0 0.0
    %345 = vmatprep.subr.mxu0 0.0
    %346 = vmatpush1.msra.mxu0 0.0
    %347 = vmatprep.subr.mxu0 0.0
    %348 = vmatpush1.msra.mxu0 0.0
    %349 = vmatprep.subr.mxu0 0.0
    %350 = vmatpush1.msra.mxu0 0.0
    %351 = vmatprep.subr.mxu0 0.0
    %352 = vmatpush1.msra.mxu0 0.0
    %353 = vmatprep.subr.mxu0 0.0
    %354 = vmatpush1.msra.mxu0 0.0
    %355 = vmatprep.subr.mxu0 0.0
    %356 = vmatpush1.msra.mxu0 0.0
    %357 = vmatprep.subr.mxu0 0.0
    %358 = vmatpush1.msra.mxu0 0.0
    %359 = vmatprep.subr.mxu0 0.0
    %360 = vmatpush1.msra.mxu0 0.0
    %361 = vmatprep.subr.mxu0 0.0
    %362 = vmatpush1.msra.mxu0 0.0
    %363 = vmatprep.subr.mxu0 0.0
    %364 = vmatpush1.msra.mxu0 0.0
    %365 = vmatprep.subr.mxu0 0.0
    %366 = vmatpush1.msra.mxu0 0.0
    %367 = vmatprep.subr.mxu0 0.0
    %368 = vmatpush1.msra.mxu0 0.0
    %369 = vmatprep.subr.mxu0 0.0
    %370 = vmatpush1.msra.mxu0 0.0
    %371 = vmatprep.subr.mxu0 0.0
    %372 = vmatpush1.msra.mxu0 0.0
    %373 = vmatprep.subr.mxu0 0.0
    %374 = vmatpush1.msra.mxu0 0.0
    %375 = vmatprep.subr.mxu0 0.0
    %376 = vmatpush1.msra.mxu0 0.0
    %377 = vmatprep.subr.mxu0 0.0
    %378 = vmatpush1.msra.mxu0 0.0
    %379 = vmatprep.subr.mxu0 0.0
    %380 = vmatpush1.msra.mxu0 0.0
    %381 = vmatprep.subr.mxu0 0.0
    %382 = vmatpush1.msra.mxu0 0.0
    %383 = vmatprep.mubr.f32.mxu0 0.0
    %384 = vmatmul.mubr.f32.gmra.mrb[0].mxu0 %v317
    %v385 = vpop.f32.mrb[0].mxu0
    %v386 = vadd.f32 0.0, %v385
    %v387 = vpop.f32.mrb[0].mxu0
    %388 = vdwg.mxu0
    %v389 = vadd.f32 %v228, %v386
    %v390 = vadd.f32 %v389, %v389
    %v391 = vsel %vm135, %v390, %v389
    %v392 = vxor.u32 %v391, 2147483648
    %v393 = vmul.f32 %v392, 1.442695
    %v394 = vpow.pop %v393
    %v395 = vadd.f32 %v394, 1.0
    %v396 = vrcp.pop %v395
    %v397 = vmul.f32 1.0, %v396
    %v398 = vadd.f32 %v397, %v397
    %v399 = vsub.f32 %v398, 1.0
    %v400 = vsel %vm135, %v399, %v397
    %v401 = vmul.f32 %v400, 0.0
    %403 = vrot.lane.b32.xlu0 %v400, 64
    %v404 = vpop.permute.xlu0 %403
    %v406 = vmul.f32 %v400, %v404
    %408 = vrot.lane.b32.xlu0 %v406, 32
    %v409 = vpop.permute.xlu0 %408
    %v411 = vadd.f32 %v401, %v409
    %v412 = vtanh.pop %v411
    %414 = vrot.lane.b32.xlu0 %v412, 64
    %v415 = vpop.permute.xlu0 %414
    %v417 = vmul.f32 %v400, %v415
    %419 = vrot.lane.b32.xlu0 %v417, 32
    %v420 = vpop.permute.xlu0 %419
    %v421 = vsel %vm315, %v420, 0
    %423 = vmatprep.subr.mxu0 0.0
    %424 = vmatpush1.msra.mxu0 %v109
    %425 = vmatprep.subr.mxu0 0.0
    %426 = vmatpush1.msra.mxu0 %v110
    %427 = vmatprep.subr.mxu0 0.0
    %428 = vmatpush1.msra.mxu0 %v111
    %429 = vmatprep.subr.mxu0 0.0
    %430 = vmatpush1.msra.mxu0 %v112
    %431 = vmatprep.subr.mxu0 0.0
    %432 = vmatpush1.msra.mxu0 0.0
    %433 = vmatprep.subr.mxu0 0.0
    %434 = vmatpush1.msra.mxu0 0.0
    %435 = vmatprep.subr.mxu0 0.0
    %436 = vmatpush1.msra.mxu0 0.0
    %437 = vmatprep.subr.mxu0 0.0
    %438 = vmatpush1.msra.mxu0 0.0
    %439 = vmatprep.subr.mxu0 0.0
    %440 = vmatpush1.msra.mxu0 0.0
    %441 = vmatprep.subr.mxu0 0.0
    %442 = vmatpush1.msra.mxu0 0.0
    %443 = vmatprep.subr.mxu0 0.0
    %444 = vmatpush1.msra.mxu0 0.0
    %445 = vmatprep.subr.mxu0 0.0
    %446 = vmatpush1.msra.mxu0 0.0
    %447 = vmatprep.subr.mxu0 0.0
    %448 = vmatpush1.msra.mxu0 0.0
    %449 = vmatprep.subr.mxu0 0.0
    %450 = vmatpush1.msra.mxu0 0.0
    %451 = vmatprep.subr.mxu0 0.0
    %452 = vmatpush1.msra.mxu0 0.0
    %453 = vmatprep.subr.mxu0 0.0
    %454 = vmatpush1.msra.mxu0 0.0
    %455 = vmatprep.subr.mxu0 0.0
    %456 = vmatpush1.msra.mxu0 0.0
    %457 = vmatprep.subr.mxu0 0.0
    %458 = vmatpush1.msra.mxu0 0.0
    %459 = vmatprep.subr.mxu0 0.0
    %460 = vmatpush1.msra.mxu0 0.0
    %461 = vmatprep.subr.mxu0 0.0
    %462 = vmatpush1.msra.mxu0 0.0
    %463 = vmatprep.subr.mxu0 0.0
    %464 = vmatpush1.msra.mxu0 0.0
    %465 = vmatprep.subr.mxu0 0.0
    %466 = vmatpush1.msra.mxu0 0.0
    %467 = vmatprep.subr.mxu0 0.0
    %468 = vmatpush1.msra.mxu0 0.0
    %469 = vmatprep.subr.mxu0 0.0
    %470 = vmatpush1.msra.mxu0 0.0
    %471 = vmatprep.subr.mxu0 0.0
    %472 = vmatpush1.msra.mxu0 0.0
    %473 = vmatprep.subr.mxu0 0.0
    %474 = vmatpush1.msra.mxu0 0.0
    %475 = vmatprep.subr.mxu0 0.0
    %476 = vmatpush1.msra.mxu0 0.0
    %477 = vmatprep.subr.mxu0 0.0
    %478 = vmatpush1.msra.mxu0 0.0
    %479 = vmatprep.subr.mxu0 0.0
    %480 = vmatpush1.msra.mxu0 0.0
    %481 = vmatprep.subr.mxu0 0.0
    %482 = vmatpush1.msra.mxu0 0.0
    %483 = vmatprep.subr.mxu0 0.0
    %484 = vmatpush1.msra.mxu0 0.0
    %485 = vmatprep.subr.mxu0 0.0
    %486 = vmatpush1.msra.mxu0 0.0
    %487 = vmatprep.mubr.f32.mxu0 0.0
    %488 = vmatmul.mubr.f32.gmra.mrb[0].mxu0 %v421
    %v489 = vpop.f32.mrb[0].mxu0
    %v490 = vadd.f32 0.0, %v489
    %v491 = vpop.f32.mrb[0].mxu0
    %492 = vdwg.mxu0
    %v494 = vrot.slane %v490, 6
    %v496 = vadd.f32 %v228, %v494
    %v497 = vadd.f32 %v496, %v496
    %v498 = vsel %vm135, %v497, %v496
    %v499 = vxor.u32 %v498, 2147483648
    %v500 = vmul.f32 %v499, 1.442695
    %v501 = vpow.pop %v500
    %v502 = vadd.f32 %v501, 1.0
    %v503 = vrcp.pop %v502
    %v504 = vmul.f32 1.0, %v503
    %v505 = vadd.f32 %v504, %v504
    %v506 = vsub.f32 %v505, 1.0
    %v507 = vsel %vm135, %v506, %v504
    %v509 = vrot.slane %v411, 6
    %v511 = vmul.f32 %v507, %v509
    %513 = vrot.lane.b32.xlu0 %v507, 64
    %v514 = vpop.permute.xlu0 %513
    %v516 = vmul.f32 %v507, %v514
    %518 = vrot.lane.b32.xlu0 %v516, 32
    %v519 = vpop.permute.xlu0 %518
    %v521 = vadd.f32 %v511, %v519
    %v522 = vtanh.pop %v521
    %524 = vrot.lane.b32.xlu0 %v522, 64
    %v525 = vpop.permute.xlu0 %524
    %v527 = vmul.f32 %v507, %v525
    %v529 = vrot.slane %v527, 2
    %530 = vrot.lane.b32.xlu0 %v529, 32
    %v531 = vpop.permute.xlu0 %530
    %v532 = vsel %vm315, %v531, 0
    %534 = vmatprep.subr.mxu0 0.0
    %535 = vmatpush1.msra.mxu0 %v109
    %536 = vmatprep.subr.mxu0 0.0
    %537 = vmatpush1.msra.mxu0 %v110
    %538 = vmatprep.subr.mxu0 0.0
    %539 = vmatpush1.msra.mxu0 %v111
    %540 = vmatprep.subr.mxu0 0.0
    %541 = vmatpush1.msra.mxu0 %v112
    %542 = vmatprep.subr.mxu0 0.0
    %543 = vmatpush1.msra.mxu0 0.0
    %544 = vmatprep.subr.mxu0 0.0
    %545 = vmatpush1.msra.mxu0 0.0
    %546 = vmatprep.subr.mxu0 0.0
    %547 = vmatpush1.msra.mxu0 0.0
    %548 = vmatprep.subr.mxu0 0.0
    %549 = vmatpush1.msra.mxu0 0.0
    %550 = vmatprep.subr.mxu0 0.0
    %551 = vmatpush1.msra.mxu0 0.0
    %552 = vmatprep.subr.mxu0 0.0
    %553 = vmatpush1.msra.mxu0 0.0
    %554 = vmatprep.subr.mxu0 0.0
    %555 = vmatpush1.msra.mxu0 0.0
    %556 = vmatprep.subr.mxu0 0.0
    %557 = vmatpush1.msra.mxu0 0.0
    %558 = vmatprep.subr.mxu0 0.0
    %559 = vmatpush1.msra.mxu0 0.0
    %560 = vmatprep.subr.mxu0 0.0
    %561 = vmatpush1.msra.mxu0 0.0
    %562 = vmatprep.subr.mxu0 0.0
    %563 = vmatpush1.msra.mxu0 0.0
    %564 = vmatprep.subr.mxu0 0.0
    %565 = vmatpush1.msra.mxu0 0.0
    %566 = vmatprep.subr.mxu0 0.0
    %567 = vmatpush1.msra.mxu0 0.0
    %568 = vmatprep.subr.mxu0 0.0
    %569 = vmatpush1.msra.mxu0 0.0
    %570 = vmatprep.subr.mxu0 0.0
    %571 = vmatpush1.msra.mxu0 0.0
    %572 = vmatprep.subr.mxu0 0.0
    %573 = vmatpush1.msra.mxu0 0.0
    %574 = vmatprep.subr.mxu0 0.0
    %575 = vmatpush1.msra.mxu0 0.0
    %576 = vmatprep.subr.mxu0 0.0
    %577 = vmatpush1.msra.mxu0 0.0
    %578 = vmatprep.subr.mxu0 0.0
    %579 = vmatpush1.msra.mxu0 0.0
    %580 = vmatprep.subr.mxu0 0.0
    %581 = vmatpush1.msra.mxu0 0.0
    %582 = vmatprep.subr.mxu0 0.0
    %583 = vmatpush1.msra.mxu0 0.0
    %584 = vmatprep.subr.mxu0 0.0
    %585 = vmatpush1.msra.mxu0 0.0
    %586 = vmatprep.subr.mxu0 0.0
    %587 = vmatpush1.msra.mxu0 0.0
    %588 = vmatprep.subr.mxu0 0.0
    %589 = vmatpush1.msra.mxu0 0.0
    %590 = vmatprep.subr.mxu0 0.0
    %591 = vmatpush1.msra.mxu0 0.0
    %592 = vmatprep.subr.mxu0 0.0
    %593 = vmatpush1.msra.mxu0 0.0
    %594 = vmatprep.subr.mxu0 0.0
    %595 = vmatpush1.msra.mxu0 0.0
    %596 = vmatprep.subr.mxu0 0.0
    %597 = vmatpush1.msra.mxu0 0.0
    %598 = vmatprep.mubr.f32.mxu0 0.0
    %599 = vmatmul.mubr.f32.gmra.mrb[0].mxu0 %v532
    %v600 = vpop.f32.mrb[0].mxu0
    %v601 = vadd.f32 0.0, %v600
    %v602 = vpop.f32.mrb[0].mxu0
    %603 = vdwg.mxu0
    %v605 = vrot.slane %v601, 4
    %v607 = vadd.f32 %v228, %v605
    %v608 = vadd.f32 %v607, %v607
    %v609 = vsel %vm135, %v608, %v607
    %v610 = vxor.u32 %v609, 2147483648
    %v611 = vmul.f32 %v610, 1.442695
    %v612 = vpow.pop %v611
    %v613 = vadd.f32 %v612, 1.0
    %v614 = vrcp.pop %v613
    %v615 = vmul.f32 1.0, %v614
    %v616 = vadd.f32 %v615, %v615
    %v617 = vsub.f32 %v616, 1.0
    %v618 = vsel %vm135, %v617, %v615
    %v620 = vrot.slane %v521, 6
    %v622 = vmul.f32 %v618, %v620
    %624 = vrot.lane.b32.xlu0 %v618, 64
    %v625 = vpop.permute.xlu0 %624
    %v627 = vmul.f32 %v618, %v625
    %629 = vrot.lane.b32.xlu0 %v627, 32
    %v630 = vpop.permute.xlu0 %629
    %v632 = vadd.f32 %v622, %v630
    %v633 = vtanh.pop %v632
    %635 = vrot.lane.b32.xlu0 %v633, 64
    %v636 = vpop.permute.xlu0 %635
    %v638 = vmul.f32 %v618, %v636
    %v640 = vrot.slane %v638, 4
    %641 = vrot.lane.b32.xlu0 %v640, 32
    %v642 = vpop.permute.xlu0 %641
    %v643 = vsel %vm315, %v642, 0
    %645 = vmatprep.subr.mxu0 0.0
    %646 = vmatpush1.msra.mxu0 %v109
    %647 = vmatprep.subr.mxu0 0.0
    %648 = vmatpush1.msra.mxu0 %v110
    %649 = vmatprep.subr.mxu0 0.0
    %650 = vmatpush1.msra.mxu0 %v111
    %651 = vmatprep.subr.mxu0 0.0
    %652 = vmatpush1.msra.mxu0 %v112
    %653 = vmatprep.subr.mxu0 0.0
    %654 = vmatpush1.msra.mxu0 0.0
    %655 = vmatprep.subr.mxu0 0.0
    %656 = vmatpush1.msra.mxu0 0.0
    %657 = vmatprep.subr.mxu0 0.0
    %658 = vmatpush1.msra.mxu0 0.0
    %659 = vmatprep.subr.mxu0 0.0
    %660 = vmatpush1.msra.mxu0 0.0
    %661 = vmatprep.subr.mxu0 0.0
    %662 = vmatpush1.msra.mxu0 0.0
    %663 = vmatprep.subr.mxu0 0.0
    %664 = vmatpush1.msra.mxu0 0.0
    %665 = vmatprep.subr.mxu0 0.0
    %666 = vmatpush1.msra.mxu0 0.0
    %667 = vmatprep.subr.mxu0 0.0
    %668 = vmatpush1.msra.mxu0 0.0
    %669 = vmatprep.subr.mxu0 0.0
    %670 = vmatpush1.msra.mxu0 0.0
    %671 = vmatprep.subr.mxu0 0.0
    %672 = vmatpush1.msra.mxu0 0.0
    %673 = vmatprep.subr.mxu0 0.0
    %674 = vmatpush1.msra.mxu0 0.0
    %675 = vmatprep.subr.mxu0 0.0
    %676 = vmatpush1.msra.mxu0 0.0
    %677 = vmatprep.subr.mxu0 0.0
    %678 = vmatpush1.msra.mxu0 0.0
    %679 = vmatprep.subr.mxu0 0.0
    %680 = vmatpush1.msra.mxu0 0.0
    %681 = vmatprep.subr.mxu0 0.0
    %682 = vmatpush1.msra.mxu0 0.0
    %683 = vmatprep.subr.mxu0 0.0
    %684 = vmatpush1.msra.mxu0 0.0
    %685 = vmatprep.subr.mxu0 0.0
    %686 = vmatpush1.msra.mxu0 0.0
    %687 = vmatprep.subr.mxu0 0.0
    %688 = vmatpush1.msra.mxu0 0.0
    %689 = vmatprep.subr.mxu0 0.0
    %690 = vmatpush1.msra.mxu0 0.0
    %691 = vmatprep.subr.mxu0 0.0
    %692 = vmatpush1.msra.mxu0 0.0
    %693 = vmatprep.subr.mxu0 0.0
    %694 = vmatpush1.msra.mxu0 0.0
    %695 = vmatprep.subr.mxu0 0.0
    %696 = vmatpush1.msra.mxu0 0.0
    %697 = vmatprep.subr.mxu0 0.0
    %698 = vmatpush1.msra.mxu0 0.0
    %699 = vmatprep.subr.mxu0 0.0
    %700 = vmatpush1.msra.mxu0 0.0
    %701 = vmatprep.subr.mxu0 0.0
    %702 = vmatpush1.msra.mxu0 0.0
    %703 = vmatprep.subr.mxu0 0.0
    %704 = vmatpush1.msra.mxu0 0.0
    %705 = vmatprep.subr.mxu0 0.0
    %706 = vmatpush1.msra.mxu0 0.0
    %707 = vmatprep.subr.mxu0 0.0
    %708 = vmatpush1.msra.mxu0 0.0
    %709 = vmatprep.mubr.f32.mxu0 0.0
    %710 = vmatmul.mubr.f32.gmra.mrb[0].mxu0 %v643
    %v711 = vpop.f32.mrb[0].mxu0
    %v712 = vadd.f32 0.0, %v711
    %v713 = vpop.f32.mrb[0].mxu0
    %714 = vdwg.mxu0
    %v716 = vrot.slane %v712, 2
    %v718 = vadd.f32 %v228, %v716
    %v719 = vadd.f32 %v718, %v718
    %v720 = vsel %vm135, %v719, %v718
    %v721 = vxor.u32 %v720, 2147483648
    %v722 = vmul.f32 %v721, 1.442695
    %v723 = vpow.pop %v722
    %v724 = vadd.f32 %v723, 1.0
    %v725 = vrcp.pop %v724
    %v726 = vmul.f32 1.0, %v725
    %v727 = vadd.f32 %v726, %v726
    %v728 = vsub.f32 %v727, 1.0
    %v729 = vsel %vm135, %v728, %v726
    %v731 = vrot.slane %v632, 6
    %v733 = vmul.f32 %v729, %v731
    %735 = vrot.lane.b32.xlu0 %v729, 64
    %v736 = vpop.permute.xlu0 %735
    %v738 = vmul.f32 %v729, %v736
    %740 = vrot.lane.b32.xlu0 %v738, 32
    %v741 = vpop.permute.xlu0 %740
    %v743 = vadd.f32 %v733, %v741
    %v744 = vtanh.pop %v743
    %746 = vrot.lane.b32.xlu0 %v744, 64
    %v747 = vpop.permute.xlu0 %746
    %v749 = vmul.f32 %v729, %v747
    %v751 = vrot.slane %v749, 6
    %752 = vrot.lane.b32.xlu0 %v751, 32
    %v753 = vpop.permute.xlu0 %752
    %v754 = vsel %vm315, %v753, 0
    %756 = vmatprep.subr.mxu0 0.0
    %757 = vmatpush1.msra.mxu0 %v109
    %758 = vmatprep.subr.mxu0 0.0
    %759 = vmatpush1.msra.mxu0 %v110
    %760 = vmatprep.subr.mxu0 0.0
    %761 = vmatpush1.msra.mxu0 %v111
    %762 = vmatprep.subr.mxu0 0.0
    %763 = vmatpush1.msra.mxu0 %v112
    %764 = vmatprep.subr.mxu0 0.0
    %765 = vmatpush1.msra.mxu0 0.0
    %766 = vmatprep.subr.mxu0 0.0
    %767 = vmatpush1.msra.mxu0 0.0
    %768 = vmatprep.subr.mxu0 0.0
    %769 = vmatpush1.msra.mxu0 0.0
    %770 = vmatprep.subr.mxu0 0.0
    %771 = vmatpush1.msra.mxu0 0.0
    %772 = vmatprep.subr.mxu0 0.0
    %773 = vmatpush1.msra.mxu0 0.0
    %774 = vmatprep.subr.mxu0 0.0
    %775 = vmatpush1.msra.mxu0 0.0
    %776 = vmatprep.subr.mxu0 0.0
    %777 = vmatpush1.msra.mxu0 0.0
    %778 = vmatprep.subr.mxu0 0.0
    %779 = vmatpush1.msra.mxu0 0.0
    %780 = vmatprep.subr.mxu0 0.0
    %781 = vmatpush1.msra.mxu0 0.0
    %782 = vmatprep.subr.mxu0 0.0
    %783 = vmatpush1.msra.mxu0 0.0
    %784 = vmatprep.subr.mxu0 0.0
    %785 = vmatpush1.msra.mxu0 0.0
    %786 = vmatprep.subr.mxu0 0.0
    %787 = vmatpush1.msra.mxu0 0.0
    %788 = vmatprep.subr.mxu0 0.0
    %789 = vmatpush1.msra.mxu0 0.0
    %790 = vmatprep.subr.mxu0 0.0
    %791 = vmatpush1.msra.mxu0 0.0
    %792 = vmatprep.subr.mxu0 0.0
    %793 = vmatpush1.msra.mxu0 0.0
    %794 = vmatprep.subr.mxu0 0.0
    %795 = vmatpush1.msra.mxu0 0.0
    %796 = vmatprep.subr.mxu0 0.0
    %797 = vmatpush1.msra.mxu0 0.0
    %798 = vmatprep.subr.mxu0 0.0
    %799 = vmatpush1.msra.mxu0 0.0
    %800 = vmatprep.subr.mxu0 0.0
    %801 = vmatpush1.msra.mxu0 0.0
    %802 = vmatprep.subr.mxu0 0.0
    %803 = vmatpush1.msra.mxu0 0.0
    %804 = vmatprep.subr.mxu0 0.0
    %805 = vmatpush1.msra.mxu0 0.0
    %806 = vmatprep.subr.mxu0 0.0
    %807 = vmatpush1.msra.mxu0 0.0
    %808 = vmatprep.subr.mxu0 0.0
    %809 = vmatpush1.msra.mxu0 0.0
    %810 = vmatprep.subr.mxu0 0.0
    %811 = vmatpush1.msra.mxu0 0.0
    %812 = vmatprep.subr.mxu0 0.0
    %813 = vmatpush1.msra.mxu0 0.0
    %814 = vmatprep.subr.mxu0 0.0
    %815 = vmatpush1.msra.mxu0 0.0
    %816 = vmatprep.subr.mxu0 0.0
    %817 = vmatpush1.msra.mxu0 0.0
    %818 = vmatprep.subr.mxu0 0.0
    %819 = vmatpush1.msra.mxu0 0.0
    %820 = vmatprep.mubr.f32.mxu0 0.0
    %821 = vmatmul.mubr.f32.gmra.mrb[0].mxu0 %v754
    %v822 = vpop.f32.mrb[0].mxu0
    %v823 = vadd.f32 0.0, %v822
    %v824 = vpop.f32.mrb[0].mxu0
    %825 = vdwg.mxu0
    %v826 = vadd.f32 %v233, %v823
    %v827 = vadd.f32 %v826, %v826
    %v828 = vsel %vm135, %v827, %v826
    %v829 = vxor.u32 %v828, 2147483648
    %v830 = vmul.f32 %v829, 1.442695
    %v831 = vpow.pop %v830
    %v832 = vadd.f32 %v831, 1.0
    %v833 = vrcp.pop %v832
    %v834 = vmul.f32 1.0, %v833
    %v835 = vadd.f32 %v834, %v834
    %v836 = vsub.f32 %v835, 1.0
    %v837 = vsel %vm135, %v836, %v834
    %v839 = vrot.slane %v743, 6
    %v841 = vmul.f32 %v837, %v839
    %843 = vrot.lane.b32.xlu0 %v837, 64
    %v844 = vpop.permute.xlu0 %843
    %v846 = vmul.f32 %v837, %v844
    %848 = vrot.lane.b32.xlu0 %v846, 32
    %v849 = vpop.permute.xlu0 %848
    %v851 = vadd.f32 %v841, %v849
    %v852 = vtanh.pop %v851
    %854 = vrot.lane.b32.xlu0 %v852, 64
    %v855 = vpop.permute.xlu0 %854
    %v857 = vmul.f32 %v837, %v855
    %859 = vrot.lane.b32.xlu0 %v857, 32
    %v860 = vpop.permute.xlu0 %859
    %v861 = vsel %vm315, %v860, 0
    %863 = vmatprep.subr.mxu0 0.0
    %864 = vmatpush1.msra.mxu0 %v109
    %865 = vmatprep.subr.mxu0 0.0
    %866 = vmatpush1.msra.mxu0 %v110
    %867 = vmatprep.subr.mxu0 0.0
    %868 = vmatpush1.msra.mxu0 %v111
    %869 = vmatprep.subr.mxu0 0.0
    %870 = vmatpush1.msra.mxu0 %v112
    %871 = vmatprep.subr.mxu0 0.0
    %872 = vmatpush1.msra.mxu0 0.0
    %873 = vmatprep.subr.mxu0 0.0
    %874 = vmatpush1.msra.mxu0 0.0
    %875 = vmatprep.subr.mxu0 0.0
    %876 = vmatpush1.msra.mxu0 0.0
    %877 = vmatprep.subr.mxu0 0.0
    %878 = vmatpush1.msra.mxu0 0.0
    %879 = vmatprep.subr.mxu0 0.0
    %880 = vmatpush1.msra.mxu0 0.0
    %881 = vmatprep.subr.mxu0 0.0
    %882 = vmatpush1.msra.mxu0 0.0
    %883 = vmatprep.subr.mxu0 0.0
    %884 = vmatpush1.msra.mxu0 0.0
    %885 = vmatprep.subr.mxu0 0.0
    %886 = vmatpush1.msra.mxu0 0.0
    %887 = vmatprep.subr.mxu0 0.0
    %888 = vmatpush1.msra.mxu0 0.0
    %889 = vmatprep.subr.mxu0 0.0
    %890 = vmatpush1.msra.mxu0 0.0
    %891 = vmatprep.subr.mxu0 0.0
    %892 = vmatpush1.msra.mxu0 0.0
    %893 = vmatprep.subr.mxu0 0.0
    %894 = vmatpush1.msra.mxu0 0.0
    %895 = vmatprep.subr.mxu0 0.0
    %896 = vmatpush1.msra.mxu0 0.0
    %897 = vmatprep.subr.mxu0 0.0
    %898 = vmatpush1.msra.mxu0 0.0
    %899 = vmatprep.subr.mxu0 0.0
    %900 = vmatpush1.msra.mxu0 0.0
    %901 = vmatprep.subr.mxu0 0.0
    %902 = vmatpush1.msra.mxu0 0.0
    %903 = vmatprep.subr.mxu0 0.0
    %904 = vmatpush1.msra.mxu0 0.0
    %905 = vmatprep.subr.mxu0 0.0
    %906 = vmatpush1.msra.mxu0 0.0
    %907 = vmatprep.subr.mxu0 0.0
    %908 = vmatpush1.msra.mxu0 0.0
    %909 = vmatprep.subr.mxu0 0.0
    %910 = vmatpush1.msra.mxu0 0.0
    %911 = vmatprep.subr.mxu0 0.0
    %912 = vmatpush1.msra.mxu0 0.0
    %913 = vmatprep.subr.mxu0 0.0
    %914 = vmatpush1.msra.mxu0 0.0
    %915 = vmatprep.subr.mxu0 0.0
    %916 = vmatpush1.msra.mxu0 0.0
    %917 = vmatprep.subr.mxu0 0.0
    %918 = vmatpush1.msra.mxu0 0.0
    %919 = vmatprep.subr.mxu0 0.0
    %920 = vmatpush1.msra.mxu0 0.0
    %921 = vmatprep.subr.mxu0 0.0
    %922 = vmatpush1.msra.mxu0 0.0
    %923 = vmatprep.subr.mxu0 0.0
    %924 = vmatpush1.msra.mxu0 0.0
    %925 = vmatprep.subr.mxu0 0.0
    %926 = vmatpush1.msra.mxu0 0.0
    %927 = vmatprep.mubr.f32.mxu0 0.0
    %928 = vmatmul.mubr.f32.gmra.mrb[0].mxu0 %v861
    %v929 = vpop.f32.mrb[0].mxu0
    %v930 = vadd.f32 0.0, %v929
    %v931 = vpop.f32.mrb[0].mxu0
    %932 = vdwg.mxu0
    %v934 = vrot.slane %v930, 6
    %v936 = vadd.f32 %v233, %v934
    %v937 = vadd.f32 %v936, %v936
    %v938 = vsel %vm135, %v937, %v936
    %v939 = vxor.u32 %v938, 2147483648
    %v940 = vmul.f32 %v939, 1.442695
    %v941 = vpow.pop %v940
    %v942 = vadd.f32 %v941, 1.0
    %v943 = vrcp.pop %v942
    %v944 = vmul.f32 1.0, %v943
    %v945 = vadd.f32 %v944, %v944
    %v946 = vsub.f32 %v945, 1.0
    %v947 = vsel %vm135, %v946, %v944
    %v949 = vrot.slane %v851, 6
    %v951 = vmul.f32 %v947, %v949
    %953 = vrot.lane.b32.xlu0 %v947, 64
    %v954 = vpop.permute.xlu0 %953
    %v956 = vmul.f32 %v947, %v954
    %958 = vrot.lane.b32.xlu0 %v956, 32
    %v959 = vpop.permute.xlu0 %958
    %v961 = vadd.f32 %v951, %v959
    %v962 = vtanh.pop %v961
    %964 = vrot.lane.b32.xlu0 %v962, 64
    %v965 = vpop.permute.xlu0 %964
    %v967 = vmul.f32 %v947, %v965
    %v969 = vrot.slane %v967, 2
    %970 = vrot.lane.b32.xlu0 %v969, 32
    %v971 = vpop.permute.xlu0 %970
    %v972 = vsel %vm315, %v971, 0
    %974 = vmatprep.subr.mxu0 0.0
    %975 = vmatpush1.msra.mxu0 %v109
    %976 = vmatprep.subr.mxu0 0.0
    %977 = vmatpush1.msra.mxu0 %v110
    %978 = vmatprep.subr.mxu0 0.0
    %979 = vmatpush1.msra.mxu0 %v111
    %980 = vmatprep.subr.mxu0 0.0
    %981 = vmatpush1.msra.mxu0 %v112
    %982 = vmatprep.subr.mxu0 0.0
    %983 = vmatpush1.msra.mxu0 0.0
    %984 = vmatprep.subr.mxu0 0.0
    %985 = vmatpush1.msra.mxu0 0.0
    %986 = vmatprep.subr.mxu0 0.0
    %987 = vmatpush1.msra.mxu0 0.0
    %988 = vmatprep.subr.mxu0 0.0
    %989 = vmatpush1.msra.mxu0 0.0
    %990 = vmatprep.subr.mxu0 0.0
    %991 = vmatpush1.msra.mxu0 0.0
    %992 = vmatprep.subr.mxu0 0.0
    %993 = vmatpush1.msra.mxu0 0.0
    %994 = vmatprep.subr.mxu0 0.0
    %995 = vmatpush1.msra.mxu0 0.0
    %996 = vmatprep.subr.mxu0 0.0
    %997 = vmatpush1.msra.mxu0 0.0
    %998 = vmatprep.subr.mxu0 0.0
    %999 = vmatpush1.msra.mxu0 0.0
    %1000 = vmatprep.subr.mxu0 0.0
    %1001 = vmatpush1.msra.mxu0 0.0
    %1002 = vmatprep.subr.mxu0 0.0
    %1003 = vmatpush1.msra.mxu0 0.0
    %1004 = vmatprep.subr.mxu0 0.0
    %1005 = vmatpush1.msra.mxu0 0.0
    %1006 = vmatprep.subr.mxu0 0.0
    %1007 = vmatpush1.msra.mxu0 0.0
    %1008 = vmatprep.subr.mxu0 0.0
    %1009 = vmatpush1.msra.mxu0 0.0
    %1010 = vmatprep.subr.mxu0 0.0
    %1011 = vmatpush1.msra.mxu0 0.0
    %1012 = vmatprep.subr.mxu0 0.0
    %1013 = vmatpush1.msra.mxu0 0.0
    %1014 = vmatprep.subr.mxu0 0.0
    %1015 = vmatpush1.msra.mxu0 0.0
    %1016 = vmatprep.subr.mxu0 0.0
    %1017 = vmatpush1.msra.mxu0 0.0
    %1018 = vmatprep.subr.mxu0 0.0
    %1019 = vmatpush1.msra.mxu0 0.0
    %1020 = vmatprep.subr.mxu0 0.0
    %1021 = vmatpush1.msra.mxu0 0.0
    %1022 = vmatprep.subr.mxu0 0.0
    %1023 = vmatpush1.msra.mxu0 0.0
    %1024 = vmatprep.subr.mxu0 0.0
    %1025 = vmatpush1.msra.mxu0 0.0
    %1026 = vmatprep.subr.mxu0 0.0
    %1027 = vmatpush1.msra.mxu0 0.0
    %1028 = vmatprep.subr.mxu0 0.0
    %1029 = vmatpush1.msra.mxu0 0.0
    %1030 = vmatprep.subr.mxu0 0.0
    %1031 = vmatpush1.msra.mxu0 0.0
    %1032 = vmatprep.subr.mxu0 0.0
    %1033 = vmatpush1.msra.mxu0 0.0
    %1034 = vmatprep.subr.mxu0 0.0
    %1035 = vmatpush1.msra.mxu0 0.0
    %1036 = vmatprep.subr.mxu0 0.0
    %1037 = vmatpush1.msra.mxu0 0.0
    %1038 = vmatprep.mubr.f32.mxu0 0.0
    %1039 = vmatmul.mubr.f32.gmra.mrb[0].mxu0 %v972
    %v1040 = vpop.f32.mrb[0].mxu0
    %v1041 = vadd.f32 0.0, %v1040
    %v1042 = vpop.f32.mrb[0].mxu0
    %1043 = vdwg.mxu0
    %v1045 = vrot.slane %v1041, 4
    %v1047 = vadd.f32 %v233, %v1045
    %v1048 = vadd.f32 %v1047, %v1047
    %v1049 = vsel %vm135, %v1048, %v1047
    %v1050 = vxor.u32 %v1049, 2147483648
    %v1051 = vmul.f32 %v1050, 1.442695
    %v1052 = vpow.pop %v1051
    %v1053 = vadd.f32 %v1052, 1.0
    %v1054 = vrcp.pop %v1053
    %v1055 = vmul.f32 1.0, %v1054
    %v1056 = vadd.f32 %v1055, %v1055
    %v1057 = vsub.f32 %v1056, 1.0
    %v1058 = vsel %vm135, %v1057, %v1055
    %v1060 = vrot.slane %v961, 6
    %v1062 = vmul.f32 %v1058, %v1060
    %1064 = vrot.lane.b32.xlu0 %v1058, 64
    %v1065 = vpop.permute.xlu0 %1064
    %v1067 = vmul.f32 %v1058, %v1065
    %1069 = vrot.lane.b32.xlu0 %v1067, 32
    %v1070 = vpop.permute.xlu0 %1069
    %v1072 = vadd.f32 %v1062, %v1070
    %v1073 = vtanh.pop %v1072
    %1075 = vrot.lane.b32.xlu0 %v1073, 64
    %v1076 = vpop.permute.xlu0 %1075
    %v1078 = vmul.f32 %v1058, %v1076
    %v1080 = vrot.slane %v1078, 4
    %1081 = vrot.lane.b32.xlu0 %v1080, 32
    %v1082 = vpop.permute.xlu0 %1081
    %v1083 = vsel %vm315, %v1082, 0
    %1085 = vmatprep.subr.mxu0 0.0
    %1086 = vmatpush1.msra.mxu0 %v109
    %1087 = vmatprep.subr.mxu0 0.0
    %1088 = vmatpush1.msra.mxu0 %v110
    %1089 = vmatprep.subr.mxu0 0.0
    %1090 = vmatpush1.msra.mxu0 %v111
    %1091 = vmatprep.subr.mxu0 0.0
    %1092 = vmatpush1.msra.mxu0 %v112
    %1093 = vmatprep.subr.mxu0 0.0
    %1094 = vmatpush1.msra.mxu0 0.0
    %1095 = vmatprep.subr.mxu0 0.0
    %1096 = vmatpush1.msra.mxu0 0.0
    %1097 = vmatprep.subr.mxu0 0.0
    %1098 = vmatpush1.msra.mxu0 0.0
    %1099 = vmatprep.subr.mxu0 0.0
    %1100 = vmatpush1.msra.mxu0 0.0
    %1101 = vmatprep.subr.mxu0 0.0
    %1102 = vmatpush1.msra.mxu0 0.0
    %1103 = vmatprep.subr.mxu0 0.0
    %1104 = vmatpush1.msra.mxu0 0.0
    %1105 = vmatprep.subr.mxu0 0.0
    %1106 = vmatpush1.msra.mxu0 0.0
    %1107 = vmatprep.subr.mxu0 0.0
    %1108 = vmatpush1.msra.mxu0 0.0
    %1109 = vmatprep.subr.mxu0 0.0
    %1110 = vmatpush1.msra.mxu0 0.0
    %1111 = vmatprep.subr.mxu0 0.0
    %1112 = vmatpush1.msra.mxu0 0.0
    %1113 = vmatprep.subr.mxu0 0.0
    %1114 = vmatpush1.msra.mxu0 0.0
    %1115 = vmatprep.subr.mxu0 0.0
    %1116 = vmatpush1.msra.mxu0 0.0
    %1117 = vmatprep.subr.mxu0 0.0
    %1118 = vmatpush1.msra.mxu0 0.0
    %1119 = vmatprep.subr.mxu0 0.0
    %1120 = vmatpush1.msra.mxu0 0.0
    %1121 = vmatprep.subr.mxu0 0.0
    %1122 = vmatpush1.msra.mxu0 0.0
    %1123 = vmatprep.subr.mxu0 0.0
    %1124 = vmatpush1.msra.mxu0 0.0
    %1125 = vmatprep.subr.mxu0 0.0
    %1126 = vmatpush1.msra.mxu0 0.0
    %1127 = vmatprep.subr.mxu0 0.0
    %1128 = vmatpush1.msra.mxu0 0.0
    %1129 = vmatprep.subr.mxu0 0.0
    %1130 = vmatpush1.msra.mxu0 0.0
    %1131 = vmatprep.subr.mxu0 0.0
    %1132 = vmatpush1.msra.mxu0 0.0
    %1133 = vmatprep.subr.mxu0 0.0
    %1134 = vmatpush1.msra.mxu0 0.0
    %1135 = vmatprep.subr.mxu0 0.0
    %1136 = vmatpush1.msra.mxu0 0.0
    %1137 = vmatprep.subr.mxu0 0.0
    %1138 = vmatpush1.msra.mxu0 0.0
    %1139 = vmatprep.subr.mxu0 0.0
    %1140 = vmatpush1.msra.mxu0 0.0
    %1141 = vmatprep.subr.mxu0 0.0
    %1142 = vmatpush1.msra.mxu0 0.0
    %1143 = vmatprep.subr.mxu0 0.0
    %1144 = vmatpush1.msra.mxu0 0.0
    %1145 = vmatprep.subr.mxu0 0.0
    %1146 = vmatpush1.msra.mxu0 0.0
    %1147 = vmatprep.subr.mxu0 0.0
    %1148 = vmatpush1.msra.mxu0 0.0
    %1149 = vmatprep.mubr.f32.mxu0 0.0
    %1150 = vmatmul.mubr.f32.gmra.mrb[0].mxu0 %v1083
    %v1151 = vpop.f32.mrb[0].mxu0
    %v1152 = vadd.f32 0.0, %v1151
    %v1153 = vpop.f32.mrb[0].mxu0
    %1154 = vdwg.mxu0
    %v1156 = vrot.slane %v1152, 2
    %v1158 = vadd.f32 %v233, %v1156
    %v1159 = vadd.f32 %v1158, %v1158
    %v1160 = vsel %vm135, %v1159, %v1158
    %v1161 = vxor.u32 %v1160, 2147483648
    %v1162 = vmul.f32 %v1161, 1.442695
    %v1163 = vpow.pop %v1162
    %v1164 = vadd.f32 %v1163, 1.0
    %v1165 = vrcp.pop %v1164
    %v1166 = vmul.f32 1.0, %v1165
    %v1167 = vadd.f32 %v1166, %v1166
    %v1168 = vsub.f32 %v1167, 1.0
    %v1169 = vsel %vm135, %v1168, %v1166
    %v1171 = vrot.slane %v1072, 6
    %v1173 = vmul.f32 %v1169, %v1171
    %1175 = vrot.lane.b32.xlu0 %v1169, 64
    %v1176 = vpop.permute.xlu0 %1175
    %v1178 = vmul.f32 %v1169, %v1176
    %1180 = vrot.lane.b32.xlu0 %v1178, 32
    %v1181 = vpop.permute.xlu0 %1180
    %v1183 = vadd.f32 %v1173, %v1181
    %v1184 = vtanh.pop %v1183
    %1186 = vrot.lane.b32.xlu0 %v1184, 64
    %v1187 = vpop.permute.xlu0 %1186
    %v1189 = vmul.f32 %v1169, %v1187
    %v1191 = vrot.slane %v1189, 6
    %1192 = vrot.lane.b32.xlu0 %v1191, 32
    %v1193 = vpop.permute.xlu0 %1192
    %v1194 = vsel %vm315, %v1193, 0
    %1196 = vmatprep.subr.mxu0 0.0
    %1197 = vmatpush1.msra.mxu0 %v116
    %1198 = vmatprep.subr.mxu0 0.0
    %1199 = vmatpush1.msra.mxu0 %v117
    %1200 = vmatprep.subr.mxu0 0.0
    %1201 = vmatpush1.msra.mxu0 %v118
    %1202 = vmatprep.subr.mxu0 0.0
    %1203 = vmatpush1.msra.mxu0 %v119
    %1204 = vmatprep.subr.mxu0 0.0
    %1205 = vmatpush1.msra.mxu0 0.0
    %1206 = vmatprep.subr.mxu0 0.0
    %1207 = vmatpush1.msra.mxu0 0.0
    %1208 = vmatprep.subr.mxu0 0.0
    %1209 = vmatpush1.msra.mxu0 0.0
    %1210 = vmatprep.subr.mxu0 0.0
    %1211 = vmatpush1.msra.mxu0 0.0
    %1212 = vmatprep.subr.mxu0 0.0
    %1213 = vmatpush1.msra.mxu0 0.0
    %1214 = vmatprep.subr.mxu0 0.0
    %1215 = vmatpush1.msra.mxu0 0.0
    %1216 = vmatprep.subr.mxu0 0.0
    %1217 = vmatpush1.msra.mxu0 0.0
    %1218 = vmatprep.subr.mxu0 0.0
    %1219 = vmatpush1.msra.mxu0 0.0
    %1220 = vmatprep.subr.mxu0 0.0
    %1221 = vmatpush1.msra.mxu0 0.0
    %1222 = vmatprep.subr.mxu0 0.0
    %1223 = vmatpush1.msra.mxu0 0.0
    %1224 = vmatprep.subr.mxu0 0.0
    %1225 = vmatpush1.msra.mxu0 0.0
    %1226 = vmatprep.subr.mxu0 0.0
    %1227 = vmatpush1.msra.mxu0 0.0
    %1228 = vmatprep.subr.mxu0 0.0
    %1229 = vmatpush1.msra.mxu0 0.0
    %1230 = vmatprep.subr.mxu0 0.0
    %1231 = vmatpush1.msra.mxu0 0.0
    %1232 = vmatprep.subr.mxu0 0.0
    %1233 = vmatpush1.msra.mxu0 0.0
    %1234 = vmatprep.subr.mxu0 0.0
    %1235 = vmatpush1.msra.mxu0 0.0
    %1236 = vmatprep.subr.mxu0 0.0
    %1237 = vmatpush1.msra.mxu0 0.0
    %1238 = vmatprep.subr.mxu0 0.0
    %1239 = vmatpush1.msra.mxu0 0.0
    %1240 = vmatprep.subr.mxu0 0.0
    %1241 = vmatpush1.msra.mxu0 0.0
    %1242 = vmatprep.subr.mxu0 0.0
    %1243 = vmatpush1.msra.mxu0 0.0
    %1244 = vmatprep.subr.mxu0 0.0
    %1245 = vmatpush1.msra.mxu0 0.0
    %1246 = vmatprep.subr.mxu0 0.0
    %1247 = vmatpush1.msra.mxu0 0.0
    %1248 = vmatprep.subr.mxu0 0.0
    %1249 = vmatpush1.msra.mxu0 0.0
    %1250 = vmatprep.subr.mxu0 0.0
    %1251 = vmatpush1.msra.mxu0 0.0
    %1252 = vmatprep.subr.mxu0 0.0
    %1253 = vmatpush1.msra.mxu0 0.0
    %1254 = vmatprep.subr.mxu0 0.0
    %1255 = vmatpush1.msra.mxu0 0.0
    %1256 = vmatprep.subr.mxu0 0.0
    %1257 = vmatpush1.msra.mxu0 0.0
    %1258 = vmatprep.subr.mxu0 0.0
    %1259 = vmatpush1.msra.mxu0 0.0
    %1260 = vmatprep.mubr.f32.mxu0 0.0
    %1261 = vmatmul.mubr.f32.gmra.mrb[0].mxu0 %v1194
    %v1262 = vpop.f32.mrb[0].mxu0
    %v1263 = vadd.f32 0.0, %v1262
    %v1264 = vpop.f32.mrb[0].mxu0
    %1265 = vdwg.mxu0
    %v1266 = vadd.f32 %v312, %v1263
    %v1267 = vadd.f32 %v1266, %v1266
    %v1268 = vsel %vm135, %v1267, %v1266
    %v1269 = vxor.u32 %v1268, 2147483648
    %v1270 = vmul.f32 %v1269, 1.442695
    %v1271 = vpow.pop %v1270
    %v1272 = vadd.f32 %v1271, 1.0
    %v1273 = vrcp.pop %v1272
    %v1274 = vmul.f32 1.0, %v1273
    %v1275 = vadd.f32 %v1274, %v1274
    %v1276 = vsub.f32 %v1275, 1.0
    %v1277 = vsel %vm135, %v1276, %v1274
    %v1279 = vrot.slane %v1183, 6
    %v1281 = vmul.f32 %v1277, %v1279
    %1283 = vrot.lane.b32.xlu0 %v1277, 64
    %v1284 = vpop.permute.xlu0 %1283
    %v1286 = vmul.f32 %v1277, %v1284
    %1288 = vrot.lane.b32.xlu0 %v1286, 32
    %v1289 = vpop.permute.xlu0 %1288
    %v1291 = vadd.f32 %v1281, %v1289
    %v1292 = vtanh.pop %v1291
    %1294 = vrot.lane.b32.xlu0 %v1292, 64
    %v1295 = vpop.permute.xlu0 %1294
    %v1297 = vmul.f32 %v1277, %v1295
    %1299 = vrot.lane.b32.xlu0 %v1297, 32
    %v1300 = vpop.permute.xlu0 %1299
    %v1301 = vsel %vm315, %v1300, 0
    %1303 = vmatprep.subr.mxu0 0.0
    %1304 = vmatpush1.msra.mxu0 %v120
    %1305 = vmatprep.subr.mxu0 0.0
    %1306 = vmatpush1.msra.mxu0 %v121
    %1307 = vmatprep.subr.mxu0 0.0
    %1308 = vmatpush1.msra.mxu0 %v122
    %1309 = vmatprep.subr.mxu0 0.0
    %1310 = vmatpush1.msra.mxu0 %v123
    %1311 = vmatprep.subr.mxu0 0.0
    %1312 = vmatpush1.msra.mxu0 0.0
    %1313 = vmatprep.subr.mxu0 0.0
    %1314 = vmatpush1.msra.mxu0 0.0
    %1315 = vmatprep.subr.mxu0 0.0
    %1316 = vmatpush1.msra.mxu0 0.0
    %1317 = vmatprep.subr.mxu0 0.0
    %1318 = vmatpush1.msra.mxu0 0.0
    %1319 = vmatprep.subr.mxu0 0.0
    %1320 = vmatpush1.msra.mxu0 0.0
    %1321 = vmatprep.subr.mxu0 0.0
    %1322 = vmatpush1.msra.mxu0 0.0
    %1323 = vmatprep.subr.mxu0 0.0
    %1324 = vmatpush1.msra.mxu0 0.0
    %1325 = vmatprep.subr.mxu0 0.0
    %1326 = vmatpush1.msra.mxu0 0.0
    %1327 = vmatprep.subr.mxu0 0.0
    %1328 = vmatpush1.msra.mxu0 0.0
    %1329 = vmatprep.subr.mxu0 0.0
    %1330 = vmatpush1.msra.mxu0 0.0
    %1331 = vmatprep.subr.mxu0 0.0
    %1332 = vmatpush1.msra.mxu0 0.0
    %1333 = vmatprep.subr.mxu0 0.0
    %1334 = vmatpush1.msra.mxu0 0.0
    %1335 = vmatprep.subr.mxu0 0.0
    %1336 = vmatpush1.msra.mxu0 0.0
    %1337 = vmatprep.subr.mxu0 0.0
    %1338 = vmatpush1.msra.mxu0 0.0
    %1339 = vmatprep.subr.mxu0 0.0
    %1340 = vmatpush1.msra.mxu0 0.0
    %1341 = vmatprep.subr.mxu0 0.0
    %1342 = vmatpush1.msra.mxu0 0.0
    %1343 = vmatprep.subr.mxu0 0.0
    %1344 = vmatpush1.msra.mxu0 0.0
    %1345 = vmatprep.subr.mxu0 0.0
    %1346 = vmatpush1.msra.mxu0 0.0
    %1347 = vmatprep.subr.mxu0 0.0
    %1348 = vmatpush1.msra.mxu0 0.0
    %1349 = vmatprep.subr.mxu0 0.0
    %1350 = vmatpush1.msra.mxu0 0.0
    %1351 = vmatprep.subr.mxu0 0.0
    %1352 = vmatpush1.msra.mxu0 0.0
    %1353 = vmatprep.subr.mxu0 0.0
    %1354 = vmatpush1.msra.mxu0 0.0
    %1355 = vmatprep.subr.mxu0 0.0
    %1356 = vmatpush1.msra.mxu0 0.0
    %1357 = vmatprep.subr.mxu0 0.0
    %1358 = vmatpush1.msra.mxu0 0.0
    %1359 = vmatprep.subr.mxu0 0.0
    %1360 = vmatpush1.msra.mxu0 0.0
    %1361 = vmatprep.subr.mxu0 0.0
    %1362 = vmatpush1.msra.mxu0 0.0
    %1363 = vmatprep.subr.mxu0 0.0
    %1364 = vmatpush1.msra.mxu0 0.0
    %1365 = vmatprep.subr.mxu0 0.0
    %1366 = vmatpush1.msra.mxu0 0.0
    %1367 = vmatprep.mubr.f32.mxu0 0.0
    %1368 = vmatmul.mubr.f32.gmra.mrb[0].mxu0 %v1301
    %v1369 = vpop.f32.mrb[0].mxu0
    %v1370 = vadd.f32 %v140, %v1369
    %v1371 = vpop.f32.mrb[0].mxu0
    %1372 = vdwg.mxu0
    %v1373 = vadd.f32 %v1370, %v1370
    %v1374 = vsel %vm135, %v1373, %v1370
    %v1375 = vxor.u32 %v1374, 2147483648
    %v1376 = vmul.f32 %v1375, 1.442695
    %v1377 = vpow.pop %v1376
    %v1378 = vadd.f32 %v1377, 1.0
    %v1379 = vrcp.pop %v1378
    %v1380 = vmul.f32 1.0, %v1379
    %v1381 = vadd.f32 %v1380, %v1380
    %v1382 = vsub.f32 %v1381, 1.0
    %v1383 = vsel %vm135, %v1382, %v1380
    %v1384 = vmul.f32 %v1383, %v1291
    %1386 = vrot.lane.b32.xlu0 %v1383, 64
    %v1387 = vpop.permute.xlu0 %1386
    %v1389 = vmul.f32 %v1383, %v1387
    %1391 = vrot.lane.b32.xlu0 %v1389, 32
    %v1392 = vpop.permute.xlu0 %1391
    %v1394 = vadd.f32 %v1384, %v1392
    %v1395 = vtanh.pop %v1394
    %1397 = vrot.lane.b32.xlu0 %v1395, 64
    %v1398 = vpop.permute.xlu0 %1397
    %v1400 = vmul.f32 %v1383, %v1398
    %1402 = vrot.lane.b32.xlu0 %v1400, 32
    %v1403 = vpop.permute.xlu0 %1402
    %v1404 = vsel %vm315, %v1403, 0
    %1406 = vmatprep.subr.mxu0 0.0
    %1407 = vmatpush1.msra.mxu0 %v120
    %1408 = vmatprep.subr.mxu0 0.0
    %1409 = vmatpush1.msra.mxu0 %v121
    %1410 = vmatprep.subr.mxu0 0.0
    %1411 = vmatpush1.msra.mxu0 %v122
    %1412 = vmatprep.subr.mxu0 0.0
    %1413 = vmatpush1.msra.mxu0 %v123
    %1414 = vmatprep.subr.mxu0 0.0
    %1415 = vmatpush1.msra.mxu0 0.0
    %1416 = vmatprep.subr.mxu0 0.0
    %1417 = vmatpush1.msra.mxu0 0.0
    %1418 = vmatprep.subr.mxu0 0.0
    %1419 = vmatpush1.msra.mxu0 0.0
    %1420 = vmatprep.subr.mxu0 0.0
    %1421 = vmatpush1.msra.mxu0 0.0
    %1422 = vmatprep.subr.mxu0 0.0
    %1423 = vmatpush1.msra.mxu0 0.0
    %1424 = vmatprep.subr.mxu0 0.0
    %1425 = vmatpush1.msra.mxu0 0.0
    %1426 = vmatprep.subr.mxu0 0.0
    %1427 = vmatpush1.msra.mxu0 0.0
    %1428 = vmatprep.subr.mxu0 0.0
    %1429 = vmatpush1.msra.mxu0 0.0
    %1430 = vmatprep.subr.mxu0 0.0
    %1431 = vmatpush1.msra.mxu0 0.0
    %1432 = vmatprep.subr.mxu0 0.0
    %1433 = vmatpush1.msra.mxu0 0.0
    %1434 = vmatprep.subr.mxu0 0.0
    %1435 = vmatpush1.msra.mxu0 0.0
    %1436 = vmatprep.subr.mxu0 0.0
    %1437 = vmatpush1.msra.mxu0 0.0
    %1438 = vmatprep.subr.mxu0 0.0
    %1439 = vmatpush1.msra.mxu0 0.0
    %1440 = vmatprep.subr.mxu0 0.0
    %1441 = vmatpush1.msra.mxu0 0.0
    %1442 = vmatprep.subr.mxu0 0.0
    %1443 = vmatpush1.msra.mxu0 0.0
    %1444 = vmatprep.subr.mxu0 0.0
    %1445 = vmatpush1.msra.mxu0 0.0
    %1446 = vmatprep.subr.mxu0 0.0
    %1447 = vmatpush1.msra.mxu0 0.0
    %1448 = vmatprep.subr.mxu0 0.0
    %1449 = vmatpush1.msra.mxu0 0.0
    %1450 = vmatprep.subr.mxu0 0.0
    %1451 = vmatpush1.msra.mxu0 0.0
    %1452 = vmatprep.subr.mxu0 0.0
    %1453 = vmatpush1.msra.mxu0 0.0
    %1454 = vmatprep.subr.mxu0 0.0
    %1455 = vmatpush1.msra.mxu0 0.0
    %1456 = vmatprep.subr.mxu0 0.0
    %1457 = vmatpush1.msra.mxu0 0.0
    %1458 = vmatprep.subr.mxu0 0.0
    %1459 = vmatpush1.msra.mxu0 0.0
    %1460 = vmatprep.subr.mxu0 0.0
    %1461 = vmatpush1.msra.mxu0 0.0
    %1462 = vmatprep.subr.mxu0 0.0
    %1463 = vmatpush1.msra.mxu0 0.0
    %1464 = vmatprep.subr.mxu0 0.0
    %1465 = vmatpush1.msra.mxu0 0.0
    %1466 = vmatprep.subr.mxu0 0.0
    %1467 = vmatpush1.msra.mxu0 0.0
    %1468 = vmatprep.subr.mxu0 0.0
    %1469 = vmatpush1.msra.mxu0 0.0
    %1470 = vmatprep.mubr.f32.mxu0 0.0
    %1471 = vmatmul.mubr.f32.gmra.mrb[0].mxu0 %v1404
    %v1472 = vpop.f32.mrb[0].mxu0
    %v1473 = vadd.f32 %v140, %v1472
    %v1474 = vpop.f32.mrb[0].mxu0
    %1475 = vdwg.mxu0
    %v1476 = vadd.f32 %v1473, %v1473
    %v1477 = vsel %vm135, %v1476, %v1473
    %v1478 = vxor.u32 %v1477, 2147483648
    %v1479 = vmul.f32 %v1478, 1.442695
    %v1480 = vpow.pop %v1479
    %v1481 = vadd.f32 %v1480, 1.0
    %v1482 = vrcp.pop %v1481
    %v1483 = vmul.f32 1.0, %v1482
    %v1484 = vadd.f32 %v1483, %v1483
    %v1485 = vsub.f32 %v1484, 1.0
    %v1486 = vsel %vm135, %v1485, %v1483
    %v1487 = vmul.f32 %v1486, %v1394
    %1489 = vrot.lane.b32.xlu0 %v1486, 64
    %v1490 = vpop.permute.xlu0 %1489
    %v1492 = vmul.f32 %v1486, %v1490
    %1494 = vrot.lane.b32.xlu0 %v1492, 32
    %v1495 = vpop.permute.xlu0 %1494
    %v1497 = vadd.f32 %v1487, %v1495
    %v1498 = vtanh.pop %v1497
    %1500 = vrot.lane.b32.xlu0 %v1498, 64
    %v1501 = vpop.permute.xlu0 %1500
    %v1503 = vmul.f32 %v1486, %v1501
    %1505 = vrot.lane.b32.xlu0 %v1503, 32
    %v1506 = vpop.permute.xlu0 %1505
    %v1507 = vsel %vm315, %v1506, 0
    %1509 = vmatprep.subr.mxu0 0.0
    %1510 = vmatpush1.msra.mxu0 %v120
    %1511 = vmatprep.subr.mxu0 0.0
    %1512 = vmatpush1.msra.mxu0 %v121
    %1513 = vmatprep.subr.mxu0 0.0
    %1514 = vmatpush1.msra.mxu0 %v122
    %1515 = vmatprep.subr.mxu0 0.0
    %1516 = vmatpush1.msra.mxu0 %v123
    %1517 = vmatprep.subr.mxu0 0.0
    %1518 = vmatpush1.msra.mxu0 0.0
    %1519 = vmatprep.subr.mxu0 0.0
    %1520 = vmatpush1.msra.mxu0 0.0
    %1521 = vmatprep.subr.mxu0 0.0
    %1522 = vmatpush1.msra.mxu0 0.0
    %1523 = vmatprep.subr.mxu0 0.0
    %1524 = vmatpush1.msra.mxu0 0.0
    %1525 = vmatprep.subr.mxu0 0.0
    %1526 = vmatpush1.msra.mxu0 0.0
    %1527 = vmatprep.subr.mxu0 0.0
    %1528 = vmatpush1.msra.mxu0 0.0
    %1529 = vmatprep.subr.mxu0 0.0
    %1530 = vmatpush1.msra.mxu0 0.0
    %1531 = vmatprep.subr.mxu0 0.0
    %1532 = vmatpush1.msra.mxu0 0.0
    %1533 = vmatprep.subr.mxu0 0.0
    %1534 = vmatpush1.msra.mxu0 0.0
    %1535 = vmatprep.subr.mxu0 0.0
    %1536 = vmatpush1.msra.mxu0 0.0
    %1537 = vmatprep.subr.mxu0 0.0
    %1538 = vmatpush1.msra.mxu0 0.0
    %1539 = vmatprep.subr.mxu0 0.0
    %1540 = vmatpush1.msra.mxu0 0.0
    %1541 = vmatprep.subr.mxu0 0.0
    %1542 = vmatpush1.msra.mxu0 0.0
    %1543 = vmatprep.subr.mxu0 0.0
    %1544 = vmatpush1.msra.mxu0 0.0
    %1545 = vmatprep.subr.mxu0 0.0
    %1546 = vmatpush1.msra.mxu0 0.0
    %1547 = vmatprep.subr.mxu0 0.0
    %1548 = vmatpush1.msra.mxu0 0.0
    %1549 = vmatprep.subr.mxu0 0.0
    %1550 = vmatpush1.msra.mxu0 0.0
    %1551 = vmatprep.subr.mxu0 0.0
    %1552 = vmatpush1.msra.mxu0 0.0
    %1553 = vmatprep.subr.mxu0 0.0
    %1554 = vmatpush1.msra.mxu0 0.0
    %1555 = vmatprep.subr.mxu0 0.0
    %1556 = vmatpush1.msra.mxu0 0.0
    %1557 = vmatprep.subr.mxu0 0.0
    %1558 = vmatpush1.msra.mxu0 0.0
    %1559 = vmatprep.subr.mxu0 0.0
    %1560 = vmatpush1.msra.mxu0 0.0
    %1561 = vmatprep.subr.mxu0 0.0
    %1562 = vmatpush1.msra.mxu0 0.0
    %1563 = vmatprep.subr.mxu0 0.0
    %1564 = vmatpush1.msra.mxu0 0.0
    %1565 = vmatprep.subr.mxu0 0.0
    %1566 = vmatpush1.msra.mxu0 0.0
    %1567 = vmatprep.subr.mxu0 0.0
    %1568 = vmatpush1.msra.mxu0 0.0
    %1569 = vmatprep.subr.mxu0 0.0
    %1570 = vmatpush1.msra.mxu0 0.0
    %1571 = vmatprep.subr.mxu0 0.0
    %1572 = vmatpush1.msra.mxu0 0.0
    %1573 = vmatprep.mubr.f32.mxu0 0.0
    %1574 = vmatmul.mubr.f32.gmra.mrb[0].mxu0 %v1507
    %v1575 = vpop.f32.mrb[0].mxu0
    %v1576 = vadd.f32 %v140, %v1575
    %v1577 = vpop.f32.mrb[0].mxu0
    %1578 = vdwg.mxu0
    %v1579 = vadd.f32 %v1576, %v1576
    %v1580 = vsel %vm135, %v1579, %v1576
    %v1581 = vxor.u32 %v1580, 2147483648
    %v1582 = vmul.f32 %v1581, 1.442695
    %v1583 = vpow.pop %v1582
    %v1584 = vadd.f32 %v1583, 1.0
    %v1585 = vrcp.pop %v1584
    %v1586 = vmul.f32 1.0, %v1585
    %v1587 = vadd.f32 %v1586, %v1586
    %v1588 = vsub.f32 %v1587, 1.0
    %v1589 = vsel %vm135, %v1588, %v1586
    %v1590 = vmul.f32 %v1589, %v1497
    %1592 = vrot.lane.b32.xlu0 %v1589, 64
    %v1593 = vpop.permute.xlu0 %1592
    %v1595 = vmul.f32 %v1589, %v1593
    %1597 = vrot.lane.b32.xlu0 %v1595, 32
    %v1598 = vpop.permute.xlu0 %1597
    %v1600 = vadd.f32 %v1590, %v1598
    %v1601 = vtanh.pop %v1600
    %1603 = vrot.lane.b32.xlu0 %v1601, 64
    %v1604 = vpop.permute.xlu0 %1603
    %v1606 = vmul.f32 %v1589, %v1604
    %v1607 = vrot.slane %v1400, 6
    %v1609 = vrot.slane %v1503, 4
    %v1612 = vrot.slane %v1606, 2
    %vm1614 = vcmask 1041408
    %v1615 = vsel %vm1614, %v1297, %v1607
    %vm1616 = vcmask 1043456
    %v1617 = vsel %vm1616, %v1615, %v1609
    %vm1618 = vcmask 1045504
    %v1619 = vsel %vm1618, %v1617, %v1612
    %1621 = vrot.lane.b32.xlu0 %v1619, 32
    %v1622 = vpop.permute.xlu0 %1621
    %v1623 = vsel %vm315, %v1622, 0
    %1625 = vmatprep.subr.mxu0 0.0
    %1626 = vmatpush1.msra.mxu0 %v126
    %1627 = vmatprep.subr.mxu0 0.0
    %1628 = vmatpush1.msra.mxu0 %v127
    %1629 = vmatprep.subr.mxu0 0.0
    %1630 = vmatpush1.msra.mxu0 %v128
    %1631 = vmatprep.subr.mxu0 0.0
    %1632 = vmatpush1.msra.mxu0 %v129
    %1633 = vmatprep.subr.mxu0 0.0
    %1634 = vmatpush1.msra.mxu0 0.0
    %1635 = vmatprep.subr.mxu0 0.0
    %1636 = vmatpush1.msra.mxu0 0.0
    %1637 = vmatprep.subr.mxu0 0.0
    %1638 = vmatpush1.msra.mxu0 0.0
    %1639 = vmatprep.subr.mxu0 0.0
    %1640 = vmatpush1.msra.mxu0 0.0
    %1641 = vmatprep.subr.mxu0 0.0
    %1642 = vmatpush1.msra.mxu0 0.0
    %1643 = vmatprep.subr.mxu0 0.0
    %1644 = vmatpush1.msra.mxu0 0.0
    %1645 = vmatprep.subr.mxu0 0.0
    %1646 = vmatpush1.msra.mxu0 0.0
    %1647 = vmatprep.subr.mxu0 0.0
    %1648 = vmatpush1.msra.mxu0 0.0
    %1649 = vmatprep.subr.mxu0 0.0
    %1650 = vmatpush1.msra.mxu0 0.0
    %1651 = vmatprep.subr.mxu0 0.0
    %1652 = vmatpush1.msra.mxu0 0.0
    %1653 = vmatprep.subr.mxu0 0.0
    %1654 = vmatpush1.msra.mxu0 0.0
    %1655 = vmatprep.subr.mxu0 0.0
    %1656 = vmatpush1.msra.mxu0 0.0
    %1657 = vmatprep.subr.mxu0 0.0
    %1658 = vmatpush1.msra.mxu0 0.0
    %1659 = vmatprep.subr.mxu0 0.0
    %1660 = vmatpush1.msra.mxu0 0.0
    %1661 = vmatprep.subr.mxu0 0.0
    %1662 = vmatpush1.msra.mxu0 0.0
    %1663 = vmatprep.subr.mxu0 0.0
    %1664 = vmatpush1.msra.mxu0 0.0
    %1665 = vmatprep.subr.mxu0 0.0
    %1666 = vmatpush1.msra.mxu0 0.0
    %1667 = vmatprep.subr.mxu0 0.0
    %1668 = vmatpush1.msra.mxu0 0.0
    %1669 = vmatprep.subr.mxu0 0.0
    %1670 = vmatpush1.msra.mxu0 0.0
    %1671 = vmatprep.subr.mxu0 0.0
    %1672 = vmatpush1.msra.mxu0 0.0
    %1673 = vmatprep.subr.mxu0 0.0
    %1674 = vmatpush1.msra.mxu0 0.0
    %1675 = vmatprep.subr.mxu0 0.0
    %1676 = vmatpush1.msra.mxu0 0.0
    %1677 = vmatprep.subr.mxu0 0.0
    %1678 = vmatpush1.msra.mxu0 0.0
    %1679 = vmatprep.subr.mxu0 0.0
    %1680 = vmatpush1.msra.mxu0 0.0
    %1681 = vmatprep.subr.mxu0 0.0
    %1682 = vmatpush1.msra.mxu0 0.0
    %1683 = vmatprep.subr.mxu0 0.0
    %1684 = vmatpush1.msra.mxu0 0.0
    %1685 = vmatprep.subr.mxu0 0.0
    %1686 = vmatpush1.msra.mxu0 0.0
    %1687 = vmatprep.subr.mxu0 0.0
    %1688 = vmatpush1.msra.mxu0 0.0
    %1689 = vmatprep.mubr.f32.mxu0 0.0
    %1690 = vmatmul.mubr.f32.gmra.mrb[0].mxu0 %v1623
    %v1691 = vpop.f32.mrb[0].mxu0
    %v1692 = vadd.f32 %v146, %v1691
    %v1693 = vpop.f32.mrb[0].mxu0
    %1694 = vdwg.mxu0
    %1695 = vst.msk [vmem:[#allocation11] sm:$0xff] %vm154, %v1692
    // Predicated region
    $region66: #{tpu_custom_call.1} parent=1 // pred_check
      _
    $region67: #{tpu_custom_call.1} parent=1 // pred_check_branch
      %1697 = sbr.rel (0) target = $region69
    $region68: #{tpu_custom_call.1} parent=1 // pred_region
      %s1699 = ssub.s32 128, 128
      %1700 = vsyncadd [#allocation4], %s1699
      %s1702 = sshll.u32 [#allocation11], 4
      %s1703 = int_to_ptr.vmem [resolvable:$true] %s1702
      %1705 = dma.vmem_to_hbm [thread:$0]  %s1703, 128, %s11, [#allocation4]
    $region69: #{tpu_custom_call.1} parent=1 // pred_fallthru
      _
    // Predicated region
    $region70: #{tpu_custom_call.1} parent=1 // pred_check
      _
    $region71: #{tpu_custom_call.1} parent=1 // pred_check_branch
      %1707 = sbr.rel (0) target = $region73
    $region72: #{tpu_custom_call.1} parent=1 // pred_region
      %1708 = dma.done [#allocation4], 128
    $region73: #{tpu_custom_call.1} parent=1 // pred_fallthru
      _
    %1709 = vsyncpa [#allocation3], 1
    %1710 = vsyncpa [#allocation6], 1
    %1711 = vsyncpa [#allocation9], 1
    %1712 = vsyncpa [#allocation4], 1

</llo_original>
